<compile_context>
chip_gen: v5e
topology: v5e:2x2
jax: 0.10.0
libtpu: 0.0.40
codegen_flags: <defaults>
</compile_context>

<pallas_src>
import functools

import jax
import jax.numpy as jnp
from jax.experimental import pallas as pl
from jax.experimental.pallas import tpu as pltpu


_SMALL_C_MAX = 32       # at/below this many classes, gather with a VPU select loop
_LANE = 128
_SUBLANE = 8


def _round_up(x, m):
    return (x + m - 1) // m * m


def _center_loss_kernel(x_ref, lab_ref, centers_ref, out_ref, *,
                        batch, tm, num_class, use_mxu, mask_rows):
    """One batch tile: gather centers, squared distance, clamp, per-tile partial sum."""
    i = pl.program_id(0)
    row0 = pl.multiple_of(i * tm, _SUBLANE)

    x = x_ref[...]                                    # (tm, Dp) f32
    lab = lab_ref[pl.ds(row0, tm), :]                 # (tm, 1)  i32  (resident labels)

    if use_mxu:
        # Row gather as a one-hot matmul on the MXU (exact: 0/1 rows select f32 values).
        cp = centers_ref.shape[0]
        class_ids = jax.lax.broadcasted_iota(jnp.int32, (tm, cp), 1)
        onehot = (class_ids == lab).astype(jnp.float32)          # (tm, Cp)
        center = jnp.dot(onehot, centers_ref[...],
                         preferred_element_type=jnp.float32)     # (tm, Dp)
    else:
        # Small-C fast path: pure VPU compare/select, no one-hot intermediate, no MXU.
        center = jnp.zeros(x.shape, jnp.float32)
        for cls in range(num_class):                  # static, fully unrolled (C <= 32)
            row = centers_ref[pl.ds(cls, 1), :]       # (1, Dp)
            center = jnp.where(lab == cls, row, center)

    diff = x - center
    dist = jnp.sum(diff * diff, axis=-1, keepdims=True)          # (tm, 1)
    dist = jnp.clip(dist, 1e-12, 1e12)
    if mask_rows:
        # Mask batch-padding rows AFTER the clamp so they contribute exactly 0.
        row_ids = row0 + jax.lax.broadcasted_iota(jnp.int32, (tm, 1), 0)
        dist = jnp.where(row_ids < batch, dist, 0.0)

    # Lane-dense per-tile partial sum; the final sum / mean happens in the wrapper,
    # so there is no carried accumulator and the grid axis can be "parallel".
    out_ref[...] = jnp.broadcast_to(jnp.sum(dist), (1, _SUBLANE, _LANE))


def center_loss(x, labels, centers, *, tm=512):
    """CenterLoss forward: mean_i clamp(||x_i - centers[labels_i]||^2, 1e-12, 1e12)."""
    B, D = x.shape
    C, Dc = centers.shape
    assert D == Dc, "feature dims of x and centers must match"

    use_mxu = C > _SMALL_C_MAX

    # Feature axis: pad to a lane multiple only when needed (skip the copy if aligned).
    Dp = _round_up(D, _LANE)
    # Batch tile: large tiles amortize per-step overhead; sublane aligned; ragged tail only.
    tm_eff = min(tm, _round_up(B, _SUBLANE))
    tm_eff = max(_SUBLANE, _round_up(tm_eff, _SUBLANE))
    Bp = _round_up(B, tm_eff)
    n_tiles = Bp // tm_eff

    x32 = x.astype(jnp.float32)
    if (Bp, Dp) != (B, D):
        x32 = jnp.pad(x32, ((0, Bp - B), (0, Dp - D)))
    lab2 = labels.astype(jnp.int32).reshape(B, 1)
    if Bp != B:
        lab2 = jnp.pad(lab2, ((0, Bp - B), (0, 0)))   # pad label 0 (valid class, rows masked)

    c32 = centers.astype(jnp.float32)
    if use_mxu:
        # K dim of the one-hot matmul; 256 granularity when it can fill a 256x256 MXU (v6e/v7x).
        c_rows = _round_up(C, 256 if C >= 256 else _LANE)
    else:
        c_rows = _round_up(C, _SUBLANE)
    if (c_rows, Dp) != (C, D):
        c32 = jnp.pad(c32, ((0, c_rows - C), (0, Dp - D)))

    kernel = functools.partial(
        _center_loss_kernel, batch=B, tm=tm_eff, num_class=C,
        use_mxu=use_mxu, mask_rows=Bp != B)

    # VMEM budget: resident centers + labels, double-buffered x tile and output tile.
    x_tile_b = tm_eff * Dp * 4
    vmem_est = (2 * x_tile_b + 2 * Bp * 4 + 2 * c_rows * Dp * 4
                + 2 * _SUBLANE * _LANE * 4 + (2 << 20))
    vmem_limit = int(min(max(vmem_est, 32 << 20), 96 << 20))
    # TODO(synk): for very large (C, D) the resident centers table should be tiled over a
    # second feature-chunk grid axis (v7x only has 64 MiB VMEM); not needed at typical sizes.

    if use_mxu:
        flops = 2 * Bp * c_rows * Dp + 4 * Bp * Dp
    else:
        flops = 2 * Bp * C * Dp + 4 * Bp * Dp
    bytes_accessed = 4 * (Bp * Dp + Bp + c_rows * Dp + n_tiles * _SUBLANE * _LANE)

    partials = pl.pallas_call(
        kernel,
        grid=(n_tiles,),
        in_specs=[
            pl.BlockSpec((tm_eff, Dp), lambda i: (i, 0)),      # x: one batch tile per step
            pl.BlockSpec((Bp, 1), lambda i: (0, 0)),           # labels: resident, sliced in kernel
            pl.BlockSpec((c_rows, Dp), lambda i: (0, 0)),      # centers: resident across the grid
        ],
        out_specs=pl.BlockSpec((1, _SUBLANE, _LANE), lambda i: (i, 0, 0)),
        out_shape=jax.ShapeDtypeStruct((n_tiles, _SUBLANE, _LANE), jnp.float32),
        compiler_params=pltpu.CompilerParams(
            dimension_semantics=("parallel",),                 # no carried accumulator
            vmem_limit_bytes=vmem_limit),
        cost_estimate=pl.CostEstimate(flops=flops, transcendentals=0,
                                      bytes_accessed=bytes_accessed),
    )(x32, lab2, c32)

    # Tiny final reduction over the per-tile partials; mean uses the true batch size.
    return jnp.sum(partials[:, 0, 0]) / B


if __name__ == "__main__":
    key = jax.random.PRNGKey(0)

    def reference(x, labels, centers):
        d = jnp.sum((x - centers[labels]) ** 2, axis=-1)
        return jnp.clip(d, 1e-12, 1e12).mean()

    # Test 1: module-default sizes (num_class=10, small feat_dim) -> VPU fast path, one tile.
    k1, k2, k3, key = jax.random.split(key, 4)
    C1, D1, B1 = 10, 8, 256
    centers1 = jax.random.normal(k1, (C1, D1), jnp.float32)   # ~ nn.Parameter(torch.randn)
    x1 = jax.random.normal(k2, (B1, D1), jnp.float32)
    lab1 = jax.random.randint(k3, (B1,), 0, C1, dtype=jnp.int32)
    loss1 = jax.jit(center_loss)(x1, lab1, centers1)
    jax.block_until_ready(loss1)
    ref1 = reference(x1, lab1, centers1)
    assert loss1.shape == () and bool(jnp.isfinite(loss1))
    assert bool(jnp.allclose(loss1, ref1, rtol=1e-5, atol=1e-6)), (float(loss1), float(ref1))

    # Test 2: larger class count + ragged batch -> MXU one-hot gather path, multi-tile grid.
    k4, k5, k6, key = jax.random.split(key, 4)
    C2, D2, B2 = 200, 96, 300
    centers2 = jax.random.normal(k4, (C2, D2), jnp.float32)
    x2 = jax.random.normal(k5, (B2, D2), jnp.float32)
    lab2 = jax.random.randint(k6, (B2,), 0, C2, dtype=jnp.int32)
    loss2 = jax.jit(functools.partial(center_loss, tm=128))(x2, lab2, centers2)
    jax.block_until_ready(loss2)
    ref2 = reference(x2, lab2, centers2)
    assert loss2.shape == () and bool(jnp.isfinite(loss2))
    assert bool(jnp.allclose(loss2, ref2, rtol=1e-5, atol=1e-6)), (float(loss2), float(ref2))

    print("KERNEL_OK")
</pallas_src>

<mosaic_0001>
module attributes {stable_mosaic.version = 11 : i64} {
  func.func @_center_loss_kernel(%arg0: i32, %arg1: memref<256x128xf32, #tpu.memory_space<vmem>>, %arg2: memref<256x1xi32, #tpu.memory_space<vmem>>, %arg3: memref<16x128xf32, #tpu.memory_space<vmem>>, %arg4: memref<1x8x128xf32, #tpu.memory_space<vmem>>) attributes {dimension_semantics = [#tpu.dimension_semantics<parallel>], iteration_bounds = array<i64: 1>, scalar_prefetch = 0 : i64, scratch_operands = 0 : i64, tpu.core_type = #tpu.core_type<tc>, window_params = [{transform_indices = @transform_0, window_bounds = array<i64: 256, 128>}, {pipeline_mode = #tpu.pipeline_mode<synchronous>, transform_indices = @transform_1, window_bounds = array<i64: 256, 1>}, {pipeline_mode = #tpu.pipeline_mode<synchronous>, transform_indices = @transform_2, window_bounds = array<i64: 16, 128>}, {transform_indices = @transform_3, window_bounds = array<i64: 1, 8, 128>}]} {
    %c256_i32 = arith.constant 256 : i32
    %0 = arith.muli %arg0, %c256_i32 : i32
    %1 = tpu.assume_multiple %0, 8 : i32
    %c0 = arith.constant 0 : index
    %c0_0 = arith.constant 0 : index
    %2 = vector.load %arg1[%c0, %c0_0] : memref<256x128xf32, #tpu.memory_space<vmem>>, vector<256x128xf32>
    %3 = arith.index_cast %1 : i32 to index
    %c0_1 = arith.constant 0 : index
    %4 = vector.load %arg2[%3, %c0_1] : memref<256x1xi32, #tpu.memory_space<vmem>>, vector<256x1xi32>
    %cst = arith.constant 0.000000e+00 : f32
    %5 = vector.broadcast %cst : f32 to vector<256x128xf32>
    %c0_2 = arith.constant 0 : index
    %c0_3 = arith.constant 0 : index
    %6 = vector.load %arg3[%c0_2, %c0_3] : memref<16x128xf32, #tpu.memory_space<vmem>>, vector<1x128xf32>
    %c0_i32 = arith.constant 0 : i32
    %7 = vector.broadcast %c0_i32 : i32 to vector<256x1xi32>
    %8 = arith.cmpi eq, %4, %7 : vector<256x1xi32>
    %9 = vector.shape_cast %8 : vector<256x1xi1> to vector<256x1xi1>
    %10 = vector.broadcast %9 : vector<256x1xi1> to vector<256x128xi1>
    %11 = vector.shape_cast %6 : vector<1x128xf32> to vector<1x128xf32>
    %12 = vector.broadcast %11 : vector<1x128xf32> to vector<256x128xf32>
    %13 = arith.select %10, %12, %5 : vector<256x128xi1>, vector<256x128xf32>
    %c1 = arith.constant 1 : index
    %c0_4 = arith.constant 0 : index
    %14 = vector.load %arg3[%c1, %c0_4] : memref<16x128xf32, #tpu.memory_space<vmem>>, vector<1x128xf32>
    %c1_i32 = arith.constant 1 : i32
    %15 = vector.broadcast %c1_i32 : i32 to vector<256x1xi32>
    %16 = arith.cmpi eq, %4, %15 : vector<256x1xi32>
    %17 = vector.shape_cast %16 : vector<256x1xi1> to vector<256x1xi1>
    %18 = vector.broadcast %17 : vector<256x1xi1> to vector<256x128xi1>
    %19 = vector.shape_cast %14 : vector<1x128xf32> to vector<1x128xf32>
    %20 = vector.broadcast %19 : vector<1x128xf32> to vector<256x128xf32>
    %21 = arith.select %18, %20, %13 : vector<256x128xi1>, vector<256x128xf32>
    %c2 = arith.constant 2 : index
    %c0_5 = arith.constant 0 : index
    %22 = vector.load %arg3[%c2, %c0_5] : memref<16x128xf32, #tpu.memory_space<vmem>>, vector<1x128xf32>
    %c2_i32 = arith.constant 2 : i32
    %23 = vector.broadcast %c2_i32 : i32 to vector<256x1xi32>
    %24 = arith.cmpi eq, %4, %23 : vector<256x1xi32>
    %25 = vector.shape_cast %24 : vector<256x1xi1> to vector<256x1xi1>
    %26 = vector.broadcast %25 : vector<256x1xi1> to vector<256x128xi1>
    %27 = vector.shape_cast %22 : vector<1x128xf32> to vector<1x128xf32>
    %28 = vector.broadcast %27 : vector<1x128xf32> to vector<256x128xf32>
    %29 = arith.select %26, %28, %21 : vector<256x128xi1>, vector<256x128xf32>
    %c3 = arith.constant 3 : index
    %c0_6 = arith.constant 0 : index
    %30 = vector.load %arg3[%c3, %c0_6] : memref<16x128xf32, #tpu.memory_space<vmem>>, vector<1x128xf32>
    %c3_i32 = arith.constant 3 : i32
    %31 = vector.broadcast %c3_i32 : i32 to vector<256x1xi32>
    %32 = arith.cmpi eq, %4, %31 : vector<256x1xi32>
    %33 = vector.shape_cast %32 : vector<256x1xi1> to vector<256x1xi1>
    %34 = vector.broadcast %33 : vector<256x1xi1> to vector<256x128xi1>
    %35 = vector.shape_cast %30 : vector<1x128xf32> to vector<1x128xf32>
    %36 = vector.broadcast %35 : vector<1x128xf32> to vector<256x128xf32>
    %37 = arith.select %34, %36, %29 : vector<256x128xi1>, vector<256x128xf32>
    %c4 = arith.constant 4 : index
    %c0_7 = arith.constant 0 : index
    %38 = vector.load %arg3[%c4, %c0_7] : memref<16x128xf32, #tpu.memory_space<vmem>>, vector<1x128xf32>
    %c4_i32 = arith.constant 4 : i32
    %39 = vector.broadcast %c4_i32 : i32 to vector<256x1xi32>
    %40 = arith.cmpi eq, %4, %39 : vector<256x1xi32>
    %41 = vector.shape_cast %40 : vector<256x1xi1> to vector<256x1xi1>
    %42 = vector.broadcast %41 : vector<256x1xi1> to vector<256x128xi1>
    %43 = vector.shape_cast %38 : vector<1x128xf32> to vector<1x128xf32>
    %44 = vector.broadcast %43 : vector<1x128xf32> to vector<256x128xf32>
    %45 = arith.select %42, %44, %37 : vector<256x128xi1>, vector<256x128xf32>
    %c5 = arith.constant 5 : index
    %c0_8 = arith.constant 0 : index
    %46 = vector.load %arg3[%c5, %c0_8] : memref<16x128xf32, #tpu.memory_space<vmem>>, vector<1x128xf32>
    %c5_i32 = arith.constant 5 : i32
    %47 = vector.broadcast %c5_i32 : i32 to vector<256x1xi32>
    %48 = arith.cmpi eq, %4, %47 : vector<256x1xi32>
    %49 = vector.shape_cast %48 : vector<256x1xi1> to vector<256x1xi1>
    %50 = vector.broadcast %49 : vector<256x1xi1> to vector<256x128xi1>
    %51 = vector.shape_cast %46 : vector<1x128xf32> to vector<1x128xf32>
    %52 = vector.broadcast %51 : vector<1x128xf32> to vector<256x128xf32>
    %53 = arith.select %50, %52, %45 : vector<256x128xi1>, vector<256x128xf32>
    %c6 = arith.constant 6 : index
    %c0_9 = arith.constant 0 : index
    %54 = vector.load %arg3[%c6, %c0_9] : memref<16x128xf32, #tpu.memory_space<vmem>>, vector<1x128xf32>
    %c6_i32 = arith.constant 6 : i32
    %55 = vector.broadcast %c6_i32 : i32 to vector<256x1xi32>
    %56 = arith.cmpi eq, %4, %55 : vector<256x1xi32>
    %57 = vector.shape_cast %56 : vector<256x1xi1> to vector<256x1xi1>
    %58 = vector.broadcast %57 : vector<256x1xi1> to vector<256x128xi1>
    %59 = vector.shape_cast %54 : vector<1x128xf32> to vector<1x128xf32>
    %60 = vector.broadcast %59 : vector<1x128xf32> to vector<256x128xf32>
    %61 = arith.select %58, %60, %53 : vector<256x128xi1>, vector<256x128xf32>
    %c7 = arith.constant 7 : index
    %c0_10 = arith.constant 0 : index
    %62 = vector.load %arg3[%c7, %c0_10] : memref<16x128xf32, #tpu.memory_space<vmem>>, vector<1x128xf32>
    %c7_i32 = arith.constant 7 : i32
    %63 = vector.broadcast %c7_i32 : i32 to vector<256x1xi32>
    %64 = arith.cmpi eq, %4, %63 : vector<256x1xi32>
    %65 = vector.shape_cast %64 : vector<256x1xi1> to vector<256x1xi1>
    %66 = vector.broadcast %65 : vector<256x1xi1> to vector<256x128xi1>
    %67 = vector.shape_cast %62 : vector<1x128xf32> to vector<1x128xf32>
    %68 = vector.broadcast %67 : vector<1x128xf32> to vector<256x128xf32>
    %69 = arith.select %66, %68, %61 : vector<256x128xi1>, vector<256x128xf32>
    %c8 = arith.constant 8 : index
    %c0_11 = arith.constant 0 : index
    %70 = vector.load %arg3[%c8, %c0_11] : memref<16x128xf32, #tpu.memory_space<vmem>>, vector<1x128xf32>
    %c8_i32 = arith.constant 8 : i32
    %71 = vector.broadcast %c8_i32 : i32 to vector<256x1xi32>
    %72 = arith.cmpi eq, %4, %71 : vector<256x1xi32>
    %73 = vector.shape_cast %72 : vector<256x1xi1> to vector<256x1xi1>
    %74 = vector.broadcast %73 : vector<256x1xi1> to vector<256x128xi1>
    %75 = vector.shape_cast %70 : vector<1x128xf32> to vector<1x128xf32>
    %76 = vector.broadcast %75 : vector<1x128xf32> to vector<256x128xf32>
    %77 = arith.select %74, %76, %69 : vector<256x128xi1>, vector<256x128xf32>
    %c9 = arith.constant 9 : index
    %c0_12 = arith.constant 0 : index
    %78 = vector.load %arg3[%c9, %c0_12] : memref<16x128xf32, #tpu.memory_space<vmem>>, vector<1x128xf32>
    %c9_i32 = arith.constant 9 : i32
    %79 = vector.broadcast %c9_i32 : i32 to vector<256x1xi32>
    %80 = arith.cmpi eq, %4, %79 : vector<256x1xi32>
    %81 = vector.shape_cast %80 : vector<256x1xi1> to vector<256x1xi1>
    %82 = vector.broadcast %81 : vector<256x1xi1> to vector<256x128xi1>
    %83 = vector.shape_cast %78 : vector<1x128xf32> to vector<1x128xf32>
    %84 = vector.broadcast %83 : vector<1x128xf32> to vector<256x128xf32>
    %85 = arith.select %82, %84, %77 : vector<256x128xi1>, vector<256x128xf32>
    %86 = arith.subf %2, %85 : vector<256x128xf32>
    %87 = arith.mulf %86, %86 : vector<256x128xf32>
    %cst_13 = arith.constant dense<0.000000e+00> : vector<256xf32>
    %88 = vector.multi_reduction <add>, %87, %cst_13 [1] : vector<256x128xf32> to vector<256xf32>
    %89 = vector.shape_cast %88 : vector<256xf32> to vector<256x1xf32>
    %cst_14 = arith.constant 9.99999996E-13 : f32
    %cst_15 = arith.constant 9.99999995E+11 : f32
    %90 = vector.broadcast %cst_14 : f32 to vector<256x1xf32>
    %91 = arith.maximumf %90, %89 : vector<256x1xf32>
    %92 = vector.broadcast %cst_15 : f32 to vector<256x1xf32>
    %93 = arith.minimumf %92, %91 : vector<256x1xf32>
    %94 = vector.shape_cast %93 : vector<256x1xf32> to vector<1x256x1xf32>
    %cst_16 = arith.constant dense<0.000000e+00> : vector<1xf32>
    %95 = vector.multi_reduction <add>, %94, %cst_16 [1, 2] : vector<1x256x1xf32> to vector<1xf32>
    %96 = vector.shape_cast %95 : vector<1xf32> to vector<1x1x1xf32>
    %97 = vector.extract %96[0, 0, 0] : f32 from vector<1x1x1xf32>
    %98 = vector.broadcast %97 : f32 to vector<1x8x128xf32>
    %c0_17 = arith.constant 0 : index
    %c0_18 = arith.constant 0 : index
    %c0_19 = arith.constant 0 : index
    %99 = vector.load %arg4[%c0_17, %c0_18, %c0_19] : memref<1x8x128xf32, #tpu.memory_space<vmem>>, vector<1x8x128xf32>
    tpu.vector_store %arg4[%c0_17, %c0_18, %c0_19], %98 {strides = array<i32>} : memref<1x8x128xf32, #tpu.memory_space<vmem>>, vector<1x8x128xf32>,
    return
  }
  func.func @transform_0(%arg0: i32) -> (i32, i32) {
    %c0_i32 = arith.constant 0 : i32
    %c0_i32_0 = arith.constant 0 : i32
    return %arg0, %c0_i32 : i32, i32
  }
  func.func @transform_1(%arg0: i32) -> (i32, i32) {
    %c0_i32 = arith.constant 0 : i32
    %c0_i32_0 = arith.constant 0 : i32
    %c0_i32_1 = arith.constant 0 : i32
    return %c0_i32, %c0_i32_0 : i32, i32
  }
  func.func @transform_2(%arg0: i32) -> (i32, i32) {
    %c0_i32 = arith.constant 0 : i32
    %c0_i32_0 = arith.constant 0 : i32
    %c0_i32_1 = arith.constant 0 : i32
    return %c0_i32, %c0_i32_0 : i32, i32
  }
  func.func @transform_3(%arg0: i32) -> (i32, i32, i32) {
    %c0_i32 = arith.constant 0 : i32
    %c0_i32_0 = arith.constant 0 : i32
    %c0_i32_1 = arith.constant 0 : i32
    return %arg0, %c0_i32, %c0_i32_0 : i32, i32, i32
  }
}

</mosaic_0001>

<llo_original>
// kernel: center_loss.1
$region0: #{center_loss.1}
  #allocation0 [shape = 'u32[]', space=smem, size = 0x4, offset = 0x4, fixed_abs, tag = 'smem constant byte address 0x4 - core index']
  #allocation1 [shape = 'u32[72,128]{1,0:T(1,128)}', space=vmem, size = 0x9000, scoped, tag = 'internal scratch']
  %s0 = inlined_call_operand.vmem [shape: f32[256,128], index: 0, kind: input, shape index: {}]
  %s1 = inlined_call_operand.vmem [shape: s32[256,1], index: 1, kind: input, shape index: {}]
  %s2 = inlined_call_operand.vmem [shape: f32[16,128], index: 2, kind: input, shape index: {}]
  %s3 = inlined_call_operand.vmem [shape: f32[1,8,128], index: 3, kind: output, shape index: {}]
  %s4 = sld [smem:[#allocation0]]
  $region22: #{center_loss.1} parent=0
    _
  %s6 = ssub.s32 1, %s4
  %s7 = scalar_select 0, %s6, %s4
  // Predicated region
  $region2: #{center_loss.1} parent=0 // pred_check
    _
  $region3: #{center_loss.1} parent=0 // pred_check_branch
    %9 = sbr.rel (0) target = $region5
  $region4: #{center_loss.1} parent=0 // pred_region
    _
  $region5: #{center_loss.1} parent=0 // pred_fallthru
    _
  // Predicated region
  $region6: #{center_loss.1} parent=0 // pred_check
    _
  $region7: #{center_loss.1} parent=0 // pred_check_branch
    %11 = sbr.rel (0) target = $region9
  $region8: #{center_loss.1} parent=0 // pred_region
    _
  $region9: #{center_loss.1} parent=0 // pred_fallthru
    _
  // Predicated region
  $region10: #{center_loss.1} parent=0 // pred_check
    _
  $region11: #{center_loss.1} parent=0 // pred_check_branch
    %13 = sbr.rel (0) target = $region13
  $region12: #{center_loss.1} parent=0 // pred_region
    _
  $region13: #{center_loss.1} parent=0 // pred_fallthru
    _
  %s14 = smul.u32 0, 256
  %v15 = vld [vmem:[%s0] sm:$0xff]
  %v16 = vld [vmem:[%s0 + $0x8] sm:$0xff]
  %v17 = vld [vmem:[%s0 + $0x10] sm:$0xff]
  %v18 = vld [vmem:[%s0 + $0x18] sm:$0xff]
  %v19 = vld [vmem:[%s0 + $0x20] sm:$0xff]
  %v20 = vld [vmem:[%s0 + $0x28] sm:$0xff]
  %v21 = vld [vmem:[%s0 + $0x30] sm:$0xff]
  %v22 = vld [vmem:[%s0 + $0x38] sm:$0xff]
  %v23 = vld [vmem:[%s0 + $0x40] sm:$0xff]
  %v24 = vld [vmem:[%s0 + $0x48] sm:$0xff]
  %v25 = vld [vmem:[%s0 + $0x50] sm:$0xff]
  %v26 = vld [vmem:[%s0 + $0x58] sm:$0xff]
  %v27 = vld [vmem:[%s0 + $0x60] sm:$0xff]
  %v28 = vld [vmem:[%s0 + $0x68] sm:$0xff]
  %v29 = vld [vmem:[%s0 + $0x70] sm:$0xff]
  %v30 = vld [vmem:[%s0 + $0x78] sm:$0xff]
  %v31 = vld [vmem:[%s0 + $0x80] sm:$0xff]
  %v32 = vld [vmem:[%s0 + $0x88] sm:$0xff]
  %v33 = vld [vmem:[%s0 + $0x90] sm:$0xff]
  %v34 = vld [vmem:[%s0 + $0x98] sm:$0xff]
  %v35 = vld [vmem:[%s0 + $0xa0] sm:$0xff]
  %v36 = vld [vmem:[%s0 + $0xa8] sm:$0xff]
  %v37 = vld [vmem:[%s0 + $0xb0] sm:$0xff]
  %v38 = vld [vmem:[%s0 + $0xb8] sm:$0xff]
  %v39 = vld [vmem:[%s0 + $0xc0] sm:$0xff]
  %v40 = vld [vmem:[%s0 + $0xc8] sm:$0xff]
  %v41 = vld [vmem:[%s0 + $0xd0] sm:$0xff]
  %v42 = vld [vmem:[%s0 + $0xd8] sm:$0xff]
  %v43 = vld [vmem:[%s0 + $0xe0] sm:$0xff]
  %v44 = vld [vmem:[%s0 + $0xe8] sm:$0xff]
  %v45 = vld [vmem:[%s0 + $0xf0] sm:$0xff]
  %v46 = vld [vmem:[%s0 + $0xf8] sm:$0xff]
  %s47 = scalar_lea.vmem %s1, %s14
  %v48 = vld [vmem:[%s47] sm:$0xff]
  %v49 = vld [vmem:[%s47 + $0x8] sm:$0xff]
  %v50 = vld [vmem:[%s47 + $0x10] sm:$0xff]
  %v51 = vld [vmem:[%s47 + $0x18] sm:$0xff]
  %v52 = vld [vmem:[%s47 + $0x20] sm:$0xff]
  %v53 = vld [vmem:[%s47 + $0x28] sm:$0xff]
  %v54 = vld [vmem:[%s47 + $0x30] sm:$0xff]
  %v55 = vld [vmem:[%s47 + $0x38] sm:$0xff]
  %v56 = vld [vmem:[%s47 + $0x40] sm:$0xff]
  %v57 = vld [vmem:[%s47 + $0x48] sm:$0xff]
  %v58 = vld [vmem:[%s47 + $0x50] sm:$0xff]
  %v59 = vld [vmem:[%s47 + $0x58] sm:$0xff]
  %v60 = vld [vmem:[%s47 + $0x60] sm:$0xff]
  %v61 = vld [vmem:[%s47 + $0x68] sm:$0xff]
  %v62 = vld [vmem:[%s47 + $0x70] sm:$0xff]
  %v63 = vld [vmem:[%s47 + $0x78] sm:$0xff]
  %v64 = vld [vmem:[%s47 + $0x80] sm:$0xff]
  %v65 = vld [vmem:[%s47 + $0x88] sm:$0xff]
  %v66 = vld [vmem:[%s47 + $0x90] sm:$0xff]
  %v67 = vld [vmem:[%s47 + $0x98] sm:$0xff]
  %v68 = vld [vmem:[%s47 + $0xa0] sm:$0xff]
  %v69 = vld [vmem:[%s47 + $0xa8] sm:$0xff]
  %v70 = vld [vmem:[%s47 + $0xb0] sm:$0xff]
  %v71 = vld [vmem:[%s47 + $0xb8] sm:$0xff]
  %v72 = vld [vmem:[%s47 + $0xc0] sm:$0xff]
  %v73 = vld [vmem:[%s47 + $0xc8] sm:$0xff]
  %v74 = vld [vmem:[%s47 + $0xd0] sm:$0xff]
  %v75 = vld [vmem:[%s47 + $0xd8] sm:$0xff]
  %v76 = vld [vmem:[%s47 + $0xe0] sm:$0xff]
  %v77 = vld [vmem:[%s47 + $0xe8] sm:$0xff]
  %v78 = vld [vmem:[%s47 + $0xf0] sm:$0xff]
  %v79 = vld [vmem:[%s47 + $0xf8] sm:$0xff]
  %v80 = vld [vmem:[%s2] sm:$0x1]
  %vm81 = vcmp.eq.s32.totalorder %v48, 0
  %vm82 = vcmp.eq.s32.totalorder %v49, 0
  %vm83 = vcmp.eq.s32.totalorder %v50, 0
  %vm84 = vcmp.eq.s32.totalorder %v51, 0
  %vm85 = vcmp.eq.s32.totalorder %v52, 0
  %vm86 = vcmp.eq.s32.totalorder %v53, 0
  %vm87 = vcmp.eq.s32.totalorder %v54, 0
  %vm88 = vcmp.eq.s32.totalorder %v55, 0
  %vm89 = vcmp.eq.s32.totalorder %v56, 0
  %vm90 = vcmp.eq.s32.totalorder %v57, 0
  %vm91 = vcmp.eq.s32.totalorder %v58, 0
  %vm92 = vcmp.eq.s32.totalorder %v59, 0
  %vm93 = vcmp.eq.s32.totalorder %v60, 0
  %vm94 = vcmp.eq.s32.totalorder %v61, 0
  %vm95 = vcmp.eq.s32.totalorder %v62, 0
  %vm96 = vcmp.eq.s32.totalorder %v63, 0
  %vm97 = vcmp.eq.s32.totalorder %v64, 0
  %vm98 = vcmp.eq.s32.totalorder %v65, 0
  %vm99 = vcmp.eq.s32.totalorder %v66, 0
  %vm100 = vcmp.eq.s32.totalorder %v67, 0
  %vm101 = vcmp.eq.s32.totalorder %v68, 0
  %vm102 = vcmp.eq.s32.totalorder %v69, 0
  %vm103 = vcmp.eq.s32.totalorder %v70, 0
  %vm104 = vcmp.eq.s32.totalorder %v71, 0
  %vm105 = vcmp.eq.s32.totalorder %v72, 0
  %vm106 = vcmp.eq.s32.totalorder %v73, 0
  %vm107 = vcmp.eq.s32.totalorder %v74, 0
  %vm108 = vcmp.eq.s32.totalorder %v75, 0
  %vm109 = vcmp.eq.s32.totalorder %v76, 0
  %vm110 = vcmp.eq.s32.totalorder %v77, 0
  %vm111 = vcmp.eq.s32.totalorder %v78, 0
  %vm112 = vcmp.eq.s32.totalorder %v79, 0
  %v113 = vsel %vm81, 1, 0
  %v114 = vsel %vm82, 1, 0
  %v115 = vsel %vm83, 1, 0
  %v116 = vsel %vm84, 1, 0
  %v117 = vsel %vm85, 1, 0
  %v118 = vsel %vm86, 1, 0
  %v119 = vsel %vm87, 1, 0
  %v120 = vsel %vm88, 1, 0
  %v121 = vsel %vm89, 1, 0
  %v122 = vsel %vm90, 1, 0
  %v123 = vsel %vm91, 1, 0
  %v124 = vsel %vm92, 1, 0
  %v125 = vsel %vm93, 1, 0
  %v126 = vsel %vm94, 1, 0
  %v127 = vsel %vm95, 1, 0
  %v128 = vsel %vm96, 1, 0
  %v129 = vsel %vm97, 1, 0
  %v130 = vsel %vm98, 1, 0
  %v131 = vsel %vm99, 1, 0
  %v132 = vsel %vm100, 1, 0
  %v133 = vsel %vm101, 1, 0
  %v134 = vsel %vm102, 1, 0
  %v135 = vsel %vm103, 1, 0
  %v136 = vsel %vm104, 1, 0
  %v137 = vsel %vm105, 1, 0
  %v138 = vsel %vm106, 1, 0
  %v139 = vsel %vm107, 1, 0
  %v140 = vsel %vm108, 1, 0
  %v141 = vsel %vm109, 1, 0
  %v142 = vsel %vm110, 1, 0
  %v143 = vsel %vm111, 1, 0
  %v144 = vsel %vm112, 1, 0
  %145 = vset.pattern.permute.xlu0 0
  %146 = vperm.xlu0 %145, %v113
  %v147 = vpop.permute.xlu0 %146
  %148 = vset.pattern.permute.xlu0 0
  %149 = vperm.xlu0 %148, %v114
  %v150 = vpop.permute.xlu0 %149
  %151 = vset.pattern.permute.xlu0 0
  %152 = vperm.xlu0 %151, %v115
  %v153 = vpop.permute.xlu0 %152
  %154 = vset.pattern.permute.xlu0 0
  %155 = vperm.xlu0 %154, %v116
  %v156 = vpop.permute.xlu0 %155
  %157 = vset.pattern.permute.xlu0 0
  %158 = vperm.xlu0 %157, %v117
  %v159 = vpop.permute.xlu0 %158
  %160 = vset.pattern.permute.xlu0 0
  %161 = vperm.xlu0 %160, %v118
  %v162 = vpop.permute.xlu0 %161
  %163 = vset.pattern.permute.xlu0 0
  %164 = vperm.xlu0 %163, %v119
  %v165 = vpop.permute.xlu0 %164
  %166 = vset.pattern.permute.xlu0 0
  %167 = vperm.xlu0 %166, %v120
  %v168 = vpop.permute.xlu0 %167
  %169 = vset.pattern.permute.xlu0 0
  %170 = vperm.xlu0 %169, %v121
  %v171 = vpop.permute.xlu0 %170
  %172 = vset.pattern.permute.xlu0 0
  %173 = vperm.xlu0 %172, %v122
  %v174 = vpop.permute.xlu0 %173
  %175 = vset.pattern.permute.xlu0 0
  %176 = vperm.xlu0 %175, %v123
  %v177 = vpop.permute.xlu0 %176
  %178 = vset.pattern.permute.xlu0 0
  %179 = vperm.xlu0 %178, %v124
  %v180 = vpop.permute.xlu0 %179
  %181 = vset.pattern.permute.xlu0 0
  %182 = vperm.xlu0 %181, %v125
  %v183 = vpop.permute.xlu0 %182
  %184 = vset.pattern.permute.xlu0 0
  %185 = vperm.xlu0 %184, %v126
  %v186 = vpop.permute.xlu0 %185
  %187 = vset.pattern.permute.xlu0 0
  %188 = vperm.xlu0 %187, %v127
  %v189 = vpop.permute.xlu0 %188
  %190 = vset.pattern.permute.xlu0 0
  %191 = vperm.xlu0 %190, %v128
  %v192 = vpop.permute.xlu0 %191
  %193 = vset.pattern.permute.xlu0 0
  %194 = vperm.xlu0 %193, %v129
  %v195 = vpop.permute.xlu0 %194
  %196 = vset.pattern.permute.xlu0 0
  %197 = vperm.xlu0 %196, %v130
  %v198 = vpop.permute.xlu0 %197
  %199 = vset.pattern.permute.xlu0 0
  %200 = vperm.xlu0 %199, %v131
  %v201 = vpop.permute.xlu0 %200
  %202 = vset.pattern.permute.xlu0 0
  %203 = vperm.xlu0 %202, %v132
  %v204 = vpop.permute.xlu0 %203
  %205 = vset.pattern.permute.xlu0 0
  %206 = vperm.xlu0 %205, %v133
  %v207 = vpop.permute.xlu0 %206
  %208 = vset.pattern.permute.xlu0 0
  %209 = vperm.xlu0 %208, %v134
  %v210 = vpop.permute.xlu0 %209
  %211 = vset.pattern.permute.xlu0 0
  %212 = vperm.xlu0 %211, %v135
  %v213 = vpop.permute.xlu0 %212
  %214 = vset.pattern.permute.xlu0 0
  %215 = vperm.xlu0 %214, %v136
  %v216 = vpop.permute.xlu0 %215
  %217 = vset.pattern.permute.xlu0 0
  %218 = vperm.xlu0 %217, %v137
  %v219 = vpop.permute.xlu0 %218
  %220 = vset.pattern.permute.xlu0 0
  %221 = vperm.xlu0 %220, %v138
  %v222 = vpop.permute.xlu0 %221
  %223 = vset.pattern.permute.xlu0 0
  %224 = vperm.xlu0 %223, %v139
  %v225 = vpop.permute.xlu0 %224
  %226 = vset.pattern.permute.xlu0 0
  %227 = vperm.xlu0 %226, %v140
  %v228 = vpop.permute.xlu0 %227
  %229 = vset.pattern.permute.xlu0 0
  %230 = vperm.xlu0 %229, %v141
  %v231 = vpop.permute.xlu0 %230
  %232 = vset.pattern.permute.xlu0 0
  %233 = vperm.xlu0 %232, %v142
  %v234 = vpop.permute.xlu0 %233
  %235 = vset.pattern.permute.xlu0 0
  %236 = vperm.xlu0 %235, %v143
  %v237 = vpop.permute.xlu0 %236
  %238 = vset.pattern.permute.xlu0 0
  %239 = vperm.xlu0 %238, %v144
  %v240 = vpop.permute.xlu0 %239
  %vm241 = vcmp.eq.s32.totalorder %v147, 1
  %vm242 = vcmp.eq.s32.totalorder %v150, 1
  %vm243 = vcmp.eq.s32.totalorder %v153, 1
  %vm244 = vcmp.eq.s32.totalorder %v156, 1
  %vm245 = vcmp.eq.s32.totalorder %v159, 1
  %vm246 = vcmp.eq.s32.totalorder %v162, 1
  %vm247 = vcmp.eq.s32.totalorder %v165, 1
  %vm248 = vcmp.eq.s32.totalorder %v168, 1
  %vm249 = vcmp.eq.s32.totalorder %v171, 1
  %vm250 = vcmp.eq.s32.totalorder %v174, 1
  %vm251 = vcmp.eq.s32.totalorder %v177, 1
  %vm252 = vcmp.eq.s32.totalorder %v180, 1
  %vm253 = vcmp.eq.s32.totalorder %v183, 1
  %vm254 = vcmp.eq.s32.totalorder %v186, 1
  %vm255 = vcmp.eq.s32.totalorder %v189, 1
  %vm256 = vcmp.eq.s32.totalorder %v192, 1
  %vm257 = vcmp.eq.s32.totalorder %v195, 1
  %vm258 = vcmp.eq.s32.totalorder %v198, 1
  %vm259 = vcmp.eq.s32.totalorder %v201, 1
  %vm260 = vcmp.eq.s32.totalorder %v204, 1
  %vm261 = vcmp.eq.s32.totalorder %v207, 1
  %vm262 = vcmp.eq.s32.totalorder %v210, 1
  %vm263 = vcmp.eq.s32.totalorder %v213, 1
  %vm264 = vcmp.eq.s32.totalorder %v216, 1
  %vm265 = vcmp.eq.s32.totalorder %v219, 1
  %vm266 = vcmp.eq.s32.totalorder %v222, 1
  %vm267 = vcmp.eq.s32.totalorder %v225, 1
  %vm268 = vcmp.eq.s32.totalorder %v228, 1
  %vm269 = vcmp.eq.s32.totalorder %v231, 1
  %vm270 = vcmp.eq.s32.totalorder %v234, 1
  %vm271 = vcmp.eq.s32.totalorder %v237, 1
  %vm272 = vcmp.eq.s32.totalorder %v240, 1
  %v273 = vperm.slane %v80, 0
  %v274 = vsel %vm241, %v273, 0.0
  %v275 = vsel %vm242, %v273, 0.0
  %v276 = vsel %vm243, %v273, 0.0
  %v277 = vsel %vm244, %v273, 0.0
  %v278 = vsel %vm245, %v273, 0.0
  %v279 = vsel %vm246, %v273, 0.0
  %v280 = vsel %vm247, %v273, 0.0
  %v281 = vsel %vm248, %v273, 0.0
  %v282 = vsel %vm249, %v273, 0.0
  %v283 = vsel %vm250, %v273, 0.0
  %v284 = vsel %vm251, %v273, 0.0
  %v285 = vsel %vm252, %v273, 0.0
  %v286 = vsel %vm253, %v273, 0.0
  %v287 = vsel %vm254, %v273, 0.0
  %v288 = vsel %vm255, %v273, 0.0
  %v289 = vsel %vm256, %v273, 0.0
  %v290 = vsel %vm257, %v273, 0.0
  %v291 = vsel %vm258, %v273, 0.0
  %v292 = vsel %vm259, %v273, 0.0
  %v293 = vsel %vm260, %v273, 0.0
  %v294 = vsel %vm261, %v273, 0.0
  %v295 = vsel %vm262, %v273, 0.0
  %v296 = vsel %vm263, %v273, 0.0
  %v297 = vsel %vm264, %v273, 0.0
  %v298 = vsel %vm265, %v273, 0.0
  %v299 = vsel %vm266, %v273, 0.0
  %v300 = vsel %vm267, %v273, 0.0
  %v301 = vsel %vm268, %v273, 0.0
  %v302 = vsel %vm269, %v273, 0.0
  %v303 = vsel %vm270, %v273, 0.0
  %v304 = vsel %vm271, %v273, 0.0
  %v305 = vsel %vm272, %v273, 0.0
  %v306 = vld [vmem:[%s2 + $0x1] sm:$0x1]
  %vm307 = vcmp.eq.s32.totalorder %v48, 1
  %vm308 = vcmp.eq.s32.totalorder %v49, 1
  %vm309 = vcmp.eq.s32.totalorder %v50, 1
  %vm310 = vcmp.eq.s32.totalorder %v51, 1
  %vm311 = vcmp.eq.s32.totalorder %v52, 1
  %vm312 = vcmp.eq.s32.totalorder %v53, 1
  %vm313 = vcmp.eq.s32.totalorder %v54, 1
  %vm314 = vcmp.eq.s32.totalorder %v55, 1
  %vm315 = vcmp.eq.s32.totalorder %v56, 1
  %vm316 = vcmp.eq.s32.totalorder %v57, 1
  %vm317 = vcmp.eq.s32.totalorder %v58, 1
  %vm318 = vcmp.eq.s32.totalorder %v59, 1
  %vm319 = vcmp.eq.s32.totalorder %v60, 1
  %vm320 = vcmp.eq.s32.totalorder %v61, 1
  %vm321 = vcmp.eq.s32.totalorder %v62, 1
  %vm322 = vcmp.eq.s32.totalorder %v63, 1
  %vm323 = vcmp.eq.s32.totalorder %v64, 1
  %vm324 = vcmp.eq.s32.totalorder %v65, 1
  %vm325 = vcmp.eq.s32.totalorder %v66, 1
  %vm326 = vcmp.eq.s32.totalorder %v67, 1
  %vm327 = vcmp.eq.s32.totalorder %v68, 1
  %vm328 = vcmp.eq.s32.totalorder %v69, 1
  %vm329 = vcmp.eq.s32.totalorder %v70, 1
  %vm330 = vcmp.eq.s32.totalorder %v71, 1
  %vm331 = vcmp.eq.s32.totalorder %v72, 1
  %vm332 = vcmp.eq.s32.totalorder %v73, 1
  %vm333 = vcmp.eq.s32.totalorder %v74, 1
  %vm334 = vcmp.eq.s32.totalorder %v75, 1
  %vm335 = vcmp.eq.s32.totalorder %v76, 1
  %vm336 = vcmp.eq.s32.totalorder %v77, 1
  %vm337 = vcmp.eq.s32.totalorder %v78, 1
  %vm338 = vcmp.eq.s32.totalorder %v79, 1
  %v339 = vsel %vm307, 1, 0
  %v340 = vsel %vm308, 1, 0
  %v341 = vsel %vm309, 1, 0
  %v342 = vsel %vm310, 1, 0
  %v343 = vsel %vm311, 1, 0
  %v344 = vsel %vm312, 1, 0
  %v345 = vsel %vm313, 1, 0
  %v346 = vsel %vm314, 1, 0
  %v347 = vsel %vm315, 1, 0
  %v348 = vsel %vm316, 1, 0
  %v349 = vsel %vm317, 1, 0
  %v350 = vsel %vm318, 1, 0
  %v351 = vsel %vm319, 1, 0
  %v352 = vsel %vm320, 1, 0
  %v353 = vsel %vm321, 1, 0
  %v354 = vsel %vm322, 1, 0
  %v355 = vsel %vm323, 1, 0
  %v356 = vsel %vm324, 1, 0
  %v357 = vsel %vm325, 1, 0
  %v358 = vsel %vm326, 1, 0
  %v359 = vsel %vm327, 1, 0
  %v360 = vsel %vm328, 1, 0
  %v361 = vsel %vm329, 1, 0
  %v362 = vsel %vm330, 1, 0
  %v363 = vsel %vm331, 1, 0
  %v364 = vsel %vm332, 1, 0
  %v365 = vsel %vm333, 1, 0
  %v366 = vsel %vm334, 1, 0
  %v367 = vsel %vm335, 1, 0
  %v368 = vsel %vm336, 1, 0
  %v369 = vsel %vm337, 1, 0
  %v370 = vsel %vm338, 1, 0
  %371 = vset.pattern.permute.xlu0 0
  %372 = vperm.xlu0 %371, %v339
  %v373 = vpop.permute.xlu0 %372
  %374 = vset.pattern.permute.xlu0 0
  %375 = vperm.xlu0 %374, %v340
  %v376 = vpop.permute.xlu0 %375
  %377 = vset.pattern.permute.xlu0 0
  %378 = vperm.xlu0 %377, %v341
  %v379 = vpop.permute.xlu0 %378
  %380 = vset.pattern.permute.xlu0 0
  %381 = vperm.xlu0 %380, %v342
  %v382 = vpop.permute.xlu0 %381
  %383 = vset.pattern.permute.xlu0 0
  %384 = vperm.xlu0 %383, %v343
  %v385 = vpop.permute.xlu0 %384
  %386 = vset.pattern.permute.xlu0 0
  %387 = vperm.xlu0 %386, %v344
  %v388 = vpop.permute.xlu0 %387
  %389 = vset.pattern.permute.xlu0 0
  %390 = vperm.xlu0 %389, %v345
  %v391 = vpop.permute.xlu0 %390
  %392 = vset.pattern.permute.xlu0 0
  %393 = vperm.xlu0 %392, %v346
  %v394 = vpop.permute.xlu0 %393
  %395 = vset.pattern.permute.xlu0 0
  %396 = vperm.xlu0 %395, %v347
  %v397 = vpop.permute.xlu0 %396
  %398 = vset.pattern.permute.xlu0 0
  %399 = vperm.xlu0 %398, %v348
  %v400 = vpop.permute.xlu0 %399
  %401 = vset.pattern.permute.xlu0 0
  %402 = vperm.xlu0 %401, %v349
  %v403 = vpop.permute.xlu0 %402
  %404 = vset.pattern.permute.xlu0 0
  %405 = vperm.xlu0 %404, %v350
  %v406 = vpop.permute.xlu0 %405
  %407 = vset.pattern.permute.xlu0 0
  %408 = vperm.xlu0 %407, %v351
  %v409 = vpop.permute.xlu0 %408
  %410 = vset.pattern.permute.xlu0 0
  %411 = vperm.xlu0 %410, %v352
  %v412 = vpop.permute.xlu0 %411
  %413 = vset.pattern.permute.xlu0 0
  %414 = vperm.xlu0 %413, %v353
  %v415 = vpop.permute.xlu0 %414
  %416 = vset.pattern.permute.xlu0 0
  %417 = vperm.xlu0 %416, %v354
  %v418 = vpop.permute.xlu0 %417
  %419 = vset.pattern.permute.xlu0 0
  %420 = vperm.xlu0 %419, %v355
  %v421 = vpop.permute.xlu0 %420
  %422 = vset.pattern.permute.xlu0 0
  %423 = vperm.xlu0 %422, %v356
  %v424 = vpop.permute.xlu0 %423
  %425 = vset.pattern.permute.xlu0 0
  %426 = vperm.xlu0 %425, %v357
  %v427 = vpop.permute.xlu0 %426
  %428 = vset.pattern.permute.xlu0 0
  %429 = vperm.xlu0 %428, %v358
  %v430 = vpop.permute.xlu0 %429
  %431 = vset.pattern.permute.xlu0 0
  %432 = vperm.xlu0 %431, %v359
  %v433 = vpop.permute.xlu0 %432
  %434 = vset.pattern.permute.xlu0 0
  %435 = vperm.xlu0 %434, %v360
  %v436 = vpop.permute.xlu0 %435
  %437 = vset.pattern.permute.xlu0 0
  %438 = vperm.xlu0 %437, %v361
  %v439 = vpop.permute.xlu0 %438
  %440 = vset.pattern.permute.xlu0 0
  %441 = vperm.xlu0 %440, %v362
  %v442 = vpop.permute.xlu0 %441
  %443 = vset.pattern.permute.xlu0 0
  %444 = vperm.xlu0 %443, %v363
  %v445 = vpop.permute.xlu0 %444
  %446 = vset.pattern.permute.xlu0 0
  %447 = vperm.xlu0 %446, %v364
  %v448 = vpop.permute.xlu0 %447
  %449 = vset.pattern.permute.xlu0 0
  %450 = vperm.xlu0 %449, %v365
  %v451 = vpop.permute.xlu0 %450
  %452 = vset.pattern.permute.xlu0 0
  %453 = vperm.xlu0 %452, %v366
  %v454 = vpop.permute.xlu0 %453
  %455 = vset.pattern.permute.xlu0 0
  %456 = vperm.xlu0 %455, %v367
  %v457 = vpop.permute.xlu0 %456
  %458 = vset.pattern.permute.xlu0 0
  %459 = vperm.xlu0 %458, %v368
  %v460 = vpop.permute.xlu0 %459
  %461 = vset.pattern.permute.xlu0 0
  %462 = vperm.xlu0 %461, %v369
  %v463 = vpop.permute.xlu0 %462
  %464 = vset.pattern.permute.xlu0 0
  %465 = vperm.xlu0 %464, %v370
  %v466 = vpop.permute.xlu0 %465
  %vm467 = vcmp.eq.s32.totalorder %v373, 1
  %vm468 = vcmp.eq.s32.totalorder %v376, 1
  %vm469 = vcmp.eq.s32.totalorder %v379, 1
  %vm470 = vcmp.eq.s32.totalorder %v382, 1
  %vm471 = vcmp.eq.s32.totalorder %v385, 1
  %vm472 = vcmp.eq.s32.totalorder %v388, 1
  %vm473 = vcmp.eq.s32.totalorder %v391, 1
  %vm474 = vcmp.eq.s32.totalorder %v394, 1
  %vm475 = vcmp.eq.s32.totalorder %v397, 1
  %vm476 = vcmp.eq.s32.totalorder %v400, 1
  %vm477 = vcmp.eq.s32.totalorder %v403, 1
  %vm478 = vcmp.eq.s32.totalorder %v406, 1
  %vm479 = vcmp.eq.s32.totalorder %v409, 1
  %vm480 = vcmp.eq.s32.totalorder %v412, 1
  %vm481 = vcmp.eq.s32.totalorder %v415, 1
  %vm482 = vcmp.eq.s32.totalorder %v418, 1
  %vm483 = vcmp.eq.s32.totalorder %v421, 1
  %vm484 = vcmp.eq.s32.totalorder %v424, 1
  %vm485 = vcmp.eq.s32.totalorder %v427, 1
  %vm486 = vcmp.eq.s32.totalorder %v430, 1
  %vm487 = vcmp.eq.s32.totalorder %v433, 1
  %vm488 = vcmp.eq.s32.totalorder %v436, 1
  %vm489 = vcmp.eq.s32.totalorder %v439, 1
  %vm490 = vcmp.eq.s32.totalorder %v442, 1
  %vm491 = vcmp.eq.s32.totalorder %v445, 1
  %vm492 = vcmp.eq.s32.totalorder %v448, 1
  %vm493 = vcmp.eq.s32.totalorder %v451, 1
  %vm494 = vcmp.eq.s32.totalorder %v454, 1
  %vm495 = vcmp.eq.s32.totalorder %v457, 1
  %vm496 = vcmp.eq.s32.totalorder %v460, 1
  %vm497 = vcmp.eq.s32.totalorder %v463, 1
  %vm498 = vcmp.eq.s32.totalorder %v466, 1
  %v499 = vperm.slane %v306, 0
  %v500 = vsel %vm467, %v499, %v274
  %v501 = vsel %vm468, %v499, %v275
  %v502 = vsel %vm469, %v499, %v276
  %v503 = vsel %vm470, %v499, %v277
  %v504 = vsel %vm471, %v499, %v278
  %v505 = vsel %vm472, %v499, %v279
  %v506 = vsel %vm473, %v499, %v280
  %v507 = vsel %vm474, %v499, %v281
  %v508 = vsel %vm475, %v499, %v282
  %v509 = vsel %vm476, %v499, %v283
  %v510 = vsel %vm477, %v499, %v284
  %v511 = vsel %vm478, %v499, %v285
  %v512 = vsel %vm479, %v499, %v286
  %v513 = vsel %vm480, %v499, %v287
  %v514 = vsel %vm481, %v499, %v288
  %v515 = vsel %vm482, %v499, %v289
  %v516 = vsel %vm483, %v499, %v290
  %v517 = vsel %vm484, %v499, %v291
  %v518 = vsel %vm485, %v499, %v292
  %v519 = vsel %vm486, %v499, %v293
  %v520 = vsel %vm487, %v499, %v294
  %v521 = vsel %vm488, %v499, %v295
  %v522 = vsel %vm489, %v499, %v296
  %v523 = vsel %vm490, %v499, %v297
  %v524 = vsel %vm491, %v499, %v298
  %v525 = vsel %vm492, %v499, %v299
  %v526 = vsel %vm493, %v499, %v300
  %v527 = vsel %vm494, %v499, %v301
  %v528 = vsel %vm495, %v499, %v302
  %v529 = vsel %vm496, %v499, %v303
  %v530 = vsel %vm497, %v499, %v304
  %v531 = vsel %vm498, %v499, %v305
  %v532 = vld [vmem:[%s2 + $0x2] sm:$0x1]
  %vm533 = vcmp.eq.s32.totalorder %v48, 2
  %vm534 = vcmp.eq.s32.totalorder %v49, 2
  %vm535 = vcmp.eq.s32.totalorder %v50, 2
  %vm536 = vcmp.eq.s32.totalorder %v51, 2
  %vm537 = vcmp.eq.s32.totalorder %v52, 2
  %vm538 = vcmp.eq.s32.totalorder %v53, 2
  %vm539 = vcmp.eq.s32.totalorder %v54, 2
  %vm540 = vcmp.eq.s32.totalorder %v55, 2
  %vm541 = vcmp.eq.s32.totalorder %v56, 2
  %vm542 = vcmp.eq.s32.totalorder %v57, 2
  %vm543 = vcmp.eq.s32.totalorder %v58, 2
  %vm544 = vcmp.eq.s32.totalorder %v59, 2
  %vm545 = vcmp.eq.s32.totalorder %v60, 2
  %vm546 = vcmp.eq.s32.totalorder %v61, 2
  %vm547 = vcmp.eq.s32.totalorder %v62, 2
  %vm548 = vcmp.eq.s32.totalorder %v63, 2
  %vm549 = vcmp.eq.s32.totalorder %v64, 2
  %vm550 = vcmp.eq.s32.totalorder %v65, 2
  %vm551 = vcmp.eq.s32.totalorder %v66, 2
  %vm552 = vcmp.eq.s32.totalorder %v67, 2
  %vm553 = vcmp.eq.s32.totalorder %v68, 2
  %vm554 = vcmp.eq.s32.totalorder %v69, 2
  %vm555 = vcmp.eq.s32.totalorder %v70, 2
  %vm556 = vcmp.eq.s32.totalorder %v71, 2
  %vm557 = vcmp.eq.s32.totalorder %v72, 2
  %vm558 = vcmp.eq.s32.totalorder %v73, 2
  %vm559 = vcmp.eq.s32.totalorder %v74, 2
  %vm560 = vcmp.eq.s32.totalorder %v75, 2
  %vm561 = vcmp.eq.s32.totalorder %v76, 2
  %vm562 = vcmp.eq.s32.totalorder %v77, 2
  %vm563 = vcmp.eq.s32.totalorder %v78, 2
  %vm564 = vcmp.eq.s32.totalorder %v79, 2
  %v565 = vsel %vm533, 1, 0
  %v566 = vsel %vm534, 1, 0
  %v567 = vsel %vm535, 1, 0
  %v568 = vsel %vm536, 1, 0
  %v569 = vsel %vm537, 1, 0
  %v570 = vsel %vm538, 1, 0
  %v571 = vsel %vm539, 1, 0
  %v572 = vsel %vm540, 1, 0
  %v573 = vsel %vm541, 1, 0
  %v574 = vsel %vm542, 1, 0
  %v575 = vsel %vm543, 1, 0
  %v576 = vsel %vm544, 1, 0
  %v577 = vsel %vm545, 1, 0
  %v578 = vsel %vm546, 1, 0
  %v579 = vsel %vm547, 1, 0
  %v580 = vsel %vm548, 1, 0
  %v581 = vsel %vm549, 1, 0
  %v582 = vsel %vm550, 1, 0
  %v583 = vsel %vm551, 1, 0
  %v584 = vsel %vm552, 1, 0
  %v585 = vsel %vm553, 1, 0
  %v586 = vsel %vm554, 1, 0
  %v587 = vsel %vm555, 1, 0
  %v588 = vsel %vm556, 1, 0
  %v589 = vsel %vm557, 1, 0
  %v590 = vsel %vm558, 1, 0
  %v591 = vsel %vm559, 1, 0
  %v592 = vsel %vm560, 1, 0
  %v593 = vsel %vm561, 1, 0
  %v594 = vsel %vm562, 1, 0
  %v595 = vsel %vm563, 1, 0
  %v596 = vsel %vm564, 1, 0
  %597 = vset.pattern.permute.xlu0 0
  %598 = vperm.xlu0 %597, %v565
  %v599 = vpop.permute.xlu0 %598
  %600 = vset.pattern.permute.xlu0 0
  %601 = vperm.xlu0 %600, %v566
  %v602 = vpop.permute.xlu0 %601
  %603 = vset.pattern.permute.xlu0 0
  %604 = vperm.xlu0 %603, %v567
  %v605 = vpop.permute.xlu0 %604
  %606 = vset.pattern.permute.xlu0 0
  %607 = vperm.xlu0 %606, %v568
  %v608 = vpop.permute.xlu0 %607
  %609 = vset.pattern.permute.xlu0 0
  %610 = vperm.xlu0 %609, %v569
  %v611 = vpop.permute.xlu0 %610
  %612 = vset.pattern.permute.xlu0 0
  %613 = vperm.xlu0 %612, %v570
  %v614 = vpop.permute.xlu0 %613
  %615 = vset.pattern.permute.xlu0 0
  %616 = vperm.xlu0 %615, %v571
  %v617 = vpop.permute.xlu0 %616
  %618 = vset.pattern.permute.xlu0 0
  %619 = vperm.xlu0 %618, %v572
  %v620 = vpop.permute.xlu0 %619
  %621 = vset.pattern.permute.xlu0 0
  %622 = vperm.xlu0 %621, %v573
  %v623 = vpop.permute.xlu0 %622
  %624 = vset.pattern.permute.xlu0 0
  %625 = vperm.xlu0 %624, %v574
  %v626 = vpop.permute.xlu0 %625
  %627 = vset.pattern.permute.xlu0 0
  %628 = vperm.xlu0 %627, %v575
  %v629 = vpop.permute.xlu0 %628
  %630 = vset.pattern.permute.xlu0 0
  %631 = vperm.xlu0 %630, %v576
  %v632 = vpop.permute.xlu0 %631
  %633 = vset.pattern.permute.xlu0 0
  %634 = vperm.xlu0 %633, %v577
  %v635 = vpop.permute.xlu0 %634
  %636 = vset.pattern.permute.xlu0 0
  %637 = vperm.xlu0 %636, %v578
  %v638 = vpop.permute.xlu0 %637
  %639 = vset.pattern.permute.xlu0 0
  %640 = vperm.xlu0 %639, %v579
  %v641 = vpop.permute.xlu0 %640
  %642 = vset.pattern.permute.xlu0 0
  %643 = vperm.xlu0 %642, %v580
  %v644 = vpop.permute.xlu0 %643
  %645 = vset.pattern.permute.xlu0 0
  %646 = vperm.xlu0 %645, %v581
  %v647 = vpop.permute.xlu0 %646
  %648 = vset.pattern.permute.xlu0 0
  %649 = vperm.xlu0 %648, %v582
  %v650 = vpop.permute.xlu0 %649
  %651 = vset.pattern.permute.xlu0 0
  %652 = vperm.xlu0 %651, %v583
  %v653 = vpop.permute.xlu0 %652
  %654 = vset.pattern.permute.xlu0 0
  %655 = vperm.xlu0 %654, %v584
  %v656 = vpop.permute.xlu0 %655
  %657 = vset.pattern.permute.xlu0 0
  %658 = vperm.xlu0 %657, %v585
  %v659 = vpop.permute.xlu0 %658
  %660 = vset.pattern.permute.xlu0 0
  %661 = vperm.xlu0 %660, %v586
  %v662 = vpop.permute.xlu0 %661
  %663 = vset.pattern.permute.xlu0 0
  %664 = vperm.xlu0 %663, %v587
  %v665 = vpop.permute.xlu0 %664
  %666 = vset.pattern.permute.xlu0 0
  %667 = vperm.xlu0 %666, %v588
  %v668 = vpop.permute.xlu0 %667
  %669 = vset.pattern.permute.xlu0 0
  %670 = vperm.xlu0 %669, %v589
  %v671 = vpop.permute.xlu0 %670
  %672 = vset.pattern.permute.xlu0 0
  %673 = vperm.xlu0 %672, %v590
  %v674 = vpop.permute.xlu0 %673
  %675 = vset.pattern.permute.xlu0 0
  %676 = vperm.xlu0 %675, %v591
  %v677 = vpop.permute.xlu0 %676
  %678 = vset.pattern.permute.xlu0 0
  %679 = vperm.xlu0 %678, %v592
  %v680 = vpop.permute.xlu0 %679
  %681 = vset.pattern.permute.xlu0 0
  %682 = vperm.xlu0 %681, %v593
  %v683 = vpop.permute.xlu0 %682
  %684 = vset.pattern.permute.xlu0 0
  %685 = vperm.xlu0 %684, %v594
  %v686 = vpop.permute.xlu0 %685
  %687 = vset.pattern.permute.xlu0 0
  %688 = vperm.xlu0 %687, %v595
  %v689 = vpop.permute.xlu0 %688
  %690 = vset.pattern.permute.xlu0 0
  %691 = vperm.xlu0 %690, %v596
  %v692 = vpop.permute.xlu0 %691
  %vm693 = vcmp.eq.s32.totalorder %v599, 1
  %vm694 = vcmp.eq.s32.totalorder %v602, 1
  %vm695 = vcmp.eq.s32.totalorder %v605, 1
  %vm696 = vcmp.eq.s32.totalorder %v608, 1
  %vm697 = vcmp.eq.s32.totalorder %v611, 1
  %vm698 = vcmp.eq.s32.totalorder %v614, 1
  %vm699 = vcmp.eq.s32.totalorder %v617, 1
  %vm700 = vcmp.eq.s32.totalorder %v620, 1
  %vm701 = vcmp.eq.s32.totalorder %v623, 1
  %vm702 = vcmp.eq.s32.totalorder %v626, 1
  %vm703 = vcmp.eq.s32.totalorder %v629, 1
  %vm704 = vcmp.eq.s32.totalorder %v632, 1
  %vm705 = vcmp.eq.s32.totalorder %v635, 1
  %vm706 = vcmp.eq.s32.totalorder %v638, 1
  %vm707 = vcmp.eq.s32.totalorder %v641, 1
  %vm708 = vcmp.eq.s32.totalorder %v644, 1
  %vm709 = vcmp.eq.s32.totalorder %v647, 1
  %vm710 = vcmp.eq.s32.totalorder %v650, 1
  %vm711 = vcmp.eq.s32.totalorder %v653, 1
  %vm712 = vcmp.eq.s32.totalorder %v656, 1
  %vm713 = vcmp.eq.s32.totalorder %v659, 1
  %vm714 = vcmp.eq.s32.totalorder %v662, 1
  %vm715 = vcmp.eq.s32.totalorder %v665, 1
  %vm716 = vcmp.eq.s32.totalorder %v668, 1
  %vm717 = vcmp.eq.s32.totalorder %v671, 1
  %vm718 = vcmp.eq.s32.totalorder %v674, 1
  %vm719 = vcmp.eq.s32.totalorder %v677, 1
  %vm720 = vcmp.eq.s32.totalorder %v680, 1
  %vm721 = vcmp.eq.s32.totalorder %v683, 1
  %vm722 = vcmp.eq.s32.totalorder %v686, 1
  %vm723 = vcmp.eq.s32.totalorder %v689, 1
  %vm724 = vcmp.eq.s32.totalorder %v692, 1
  %v725 = vperm.slane %v532, 0
  %v726 = vsel %vm693, %v725, %v500
  %v727 = vsel %vm694, %v725, %v501
  %v728 = vsel %vm695, %v725, %v502
  %v729 = vsel %vm696, %v725, %v503
  %v730 = vsel %vm697, %v725, %v504
  %v731 = vsel %vm698, %v725, %v505
  %v732 = vsel %vm699, %v725, %v506
  %v733 = vsel %vm700, %v725, %v507
  %v734 = vsel %vm701, %v725, %v508
  %v735 = vsel %vm702, %v725, %v509
  %v736 = vsel %vm703, %v725, %v510
  %v737 = vsel %vm704, %v725, %v511
  %v738 = vsel %vm705, %v725, %v512
  %v739 = vsel %vm706, %v725, %v513
  %v740 = vsel %vm707, %v725, %v514
  %v741 = vsel %vm708, %v725, %v515
  %v742 = vsel %vm709, %v725, %v516
  %v743 = vsel %vm710, %v725, %v517
  %v744 = vsel %vm711, %v725, %v518
  %v745 = vsel %vm712, %v725, %v519
  %v746 = vsel %vm713, %v725, %v520
  %v747 = vsel %vm714, %v725, %v521
  %v748 = vsel %vm715, %v725, %v522
  %v749 = vsel %vm716, %v725, %v523
  %v750 = vsel %vm717, %v725, %v524
  %v751 = vsel %vm718, %v725, %v525
  %v752 = vsel %vm719, %v725, %v526
  %v753 = vsel %vm720, %v725, %v527
  %v754 = vsel %vm721, %v725, %v528
  %v755 = vsel %vm722, %v725, %v529
  %v756 = vsel %vm723, %v725, %v530
  %v757 = vsel %vm724, %v725, %v531
  %v758 = vld [vmem:[%s2 + $0x3] sm:$0x1]
  %vm759 = vcmp.eq.s32.totalorder %v48, 3
  %vm760 = vcmp.eq.s32.totalorder %v49, 3
  %vm761 = vcmp.eq.s32.totalorder %v50, 3
  %vm762 = vcmp.eq.s32.totalorder %v51, 3
  %vm763 = vcmp.eq.s32.totalorder %v52, 3
  %vm764 = vcmp.eq.s32.totalorder %v53, 3
  %vm765 = vcmp.eq.s32.totalorder %v54, 3
  %vm766 = vcmp.eq.s32.totalorder %v55, 3
  %vm767 = vcmp.eq.s32.totalorder %v56, 3
  %vm768 = vcmp.eq.s32.totalorder %v57, 3
  %vm769 = vcmp.eq.s32.totalorder %v58, 3
  %vm770 = vcmp.eq.s32.totalorder %v59, 3
  %vm771 = vcmp.eq.s32.totalorder %v60, 3
  %vm772 = vcmp.eq.s32.totalorder %v61, 3
  %vm773 = vcmp.eq.s32.totalorder %v62, 3
  %vm774 = vcmp.eq.s32.totalorder %v63, 3
  %vm775 = vcmp.eq.s32.totalorder %v64, 3
  %vm776 = vcmp.eq.s32.totalorder %v65, 3
  %vm777 = vcmp.eq.s32.totalorder %v66, 3
  %vm778 = vcmp.eq.s32.totalorder %v67, 3
  %vm779 = vcmp.eq.s32.totalorder %v68, 3
  %vm780 = vcmp.eq.s32.totalorder %v69, 3
  %vm781 = vcmp.eq.s32.totalorder %v70, 3
  %vm782 = vcmp.eq.s32.totalorder %v71, 3
  %vm783 = vcmp.eq.s32.totalorder %v72, 3
  %vm784 = vcmp.eq.s32.totalorder %v73, 3
  %vm785 = vcmp.eq.s32.totalorder %v74, 3
  %vm786 = vcmp.eq.s32.totalorder %v75, 3
  %vm787 = vcmp.eq.s32.totalorder %v76, 3
  %vm788 = vcmp.eq.s32.totalorder %v77, 3
  %vm789 = vcmp.eq.s32.totalorder %v78, 3
  %vm790 = vcmp.eq.s32.totalorder %v79, 3
  %v791 = vsel %vm759, 1, 0
  %v792 = vsel %vm760, 1, 0
  %v793 = vsel %vm761, 1, 0
  %v794 = vsel %vm762, 1, 0
  %v795 = vsel %vm763, 1, 0
  %v796 = vsel %vm764, 1, 0
  %v797 = vsel %vm765, 1, 0
  %v798 = vsel %vm766, 1, 0
  %v799 = vsel %vm767, 1, 0
  %v800 = vsel %vm768, 1, 0
  %v801 = vsel %vm769, 1, 0
  %v802 = vsel %vm770, 1, 0
  %v803 = vsel %vm771, 1, 0
  %v804 = vsel %vm772, 1, 0
  %v805 = vsel %vm773, 1, 0
  %v806 = vsel %vm774, 1, 0
  %v807 = vsel %vm775, 1, 0
  %v808 = vsel %vm776, 1, 0
  %v809 = vsel %vm777, 1, 0
  %v810 = vsel %vm778, 1, 0
  %v811 = vsel %vm779, 1, 0
  %v812 = vsel %vm780, 1, 0
  %v813 = vsel %vm781, 1, 0
  %v814 = vsel %vm782, 1, 0
  %v815 = vsel %vm783, 1, 0
  %v816 = vsel %vm784, 1, 0
  %v817 = vsel %vm785, 1, 0
  %v818 = vsel %vm786, 1, 0
  %v819 = vsel %vm787, 1, 0
  %v820 = vsel %vm788, 1, 0
  %v821 = vsel %vm789, 1, 0
  %v822 = vsel %vm790, 1, 0
  %823 = vset.pattern.permute.xlu0 0
  %824 = vperm.xlu0 %823, %v791
  %v825 = vpop.permute.xlu0 %824
  %826 = vset.pattern.permute.xlu0 0
  %827 = vperm.xlu0 %826, %v792
  %v828 = vpop.permute.xlu0 %827
  %829 = vset.pattern.permute.xlu0 0
  %830 = vperm.xlu0 %829, %v793
  %v831 = vpop.permute.xlu0 %830
  %832 = vset.pattern.permute.xlu0 0
  %833 = vperm.xlu0 %832, %v794
  %v834 = vpop.permute.xlu0 %833
  %835 = vset.pattern.permute.xlu0 0
  %836 = vperm.xlu0 %835, %v795
  %v837 = vpop.permute.xlu0 %836
  %838 = vset.pattern.permute.xlu0 0
  %839 = vperm.xlu0 %838, %v796
  %v840 = vpop.permute.xlu0 %839
  %841 = vset.pattern.permute.xlu0 0
  %842 = vperm.xlu0 %841, %v797
  %v843 = vpop.permute.xlu0 %842
  %844 = vset.pattern.permute.xlu0 0
  %845 = vperm.xlu0 %844, %v798
  %v846 = vpop.permute.xlu0 %845
  %847 = vset.pattern.permute.xlu0 0
  %848 = vperm.xlu0 %847, %v799
  %v849 = vpop.permute.xlu0 %848
  %850 = vset.pattern.permute.xlu0 0
  %851 = vperm.xlu0 %850, %v800
  %v852 = vpop.permute.xlu0 %851
  %853 = vset.pattern.permute.xlu0 0
  %854 = vperm.xlu0 %853, %v801
  %v855 = vpop.permute.xlu0 %854
  %856 = vset.pattern.permute.xlu0 0
  %857 = vperm.xlu0 %856, %v802
  %v858 = vpop.permute.xlu0 %857
  %859 = vset.pattern.permute.xlu0 0
  %860 = vperm.xlu0 %859, %v803
  %v861 = vpop.permute.xlu0 %860
  %862 = vset.pattern.permute.xlu0 0
  %863 = vperm.xlu0 %862, %v804
  %v864 = vpop.permute.xlu0 %863
  %865 = vset.pattern.permute.xlu0 0
  %866 = vperm.xlu0 %865, %v805
  %v867 = vpop.permute.xlu0 %866
  %868 = vset.pattern.permute.xlu0 0
  %869 = vperm.xlu0 %868, %v806
  %v870 = vpop.permute.xlu0 %869
  %871 = vset.pattern.permute.xlu0 0
  %872 = vperm.xlu0 %871, %v807
  %v873 = vpop.permute.xlu0 %872
  %874 = vset.pattern.permute.xlu0 0
  %875 = vperm.xlu0 %874, %v808
  %v876 = vpop.permute.xlu0 %875
  %877 = vset.pattern.permute.xlu0 0
  %878 = vperm.xlu0 %877, %v809
  %v879 = vpop.permute.xlu0 %878
  %880 = vset.pattern.permute.xlu0 0
  %881 = vperm.xlu0 %880, %v810
  %v882 = vpop.permute.xlu0 %881
  %883 = vset.pattern.permute.xlu0 0
  %884 = vperm.xlu0 %883, %v811
  %v885 = vpop.permute.xlu0 %884
  %886 = vset.pattern.permute.xlu0 0
  %887 = vperm.xlu0 %886, %v812
  %v888 = vpop.permute.xlu0 %887
  %889 = vset.pattern.permute.xlu0 0
  %890 = vperm.xlu0 %889, %v813
  %v891 = vpop.permute.xlu0 %890
  %892 = vset.pattern.permute.xlu0 0
  %893 = vperm.xlu0 %892, %v814
  %v894 = vpop.permute.xlu0 %893
  %895 = vset.pattern.permute.xlu0 0
  %896 = vperm.xlu0 %895, %v815
  %v897 = vpop.permute.xlu0 %896
  %898 = vset.pattern.permute.xlu0 0
  %899 = vperm.xlu0 %898, %v816
  %v900 = vpop.permute.xlu0 %899
  %901 = vset.pattern.permute.xlu0 0
  %902 = vperm.xlu0 %901, %v817
  %v903 = vpop.permute.xlu0 %902
  %904 = vset.pattern.permute.xlu0 0
  %905 = vperm.xlu0 %904, %v818
  %v906 = vpop.permute.xlu0 %905
  %907 = vset.pattern.permute.xlu0 0
  %908 = vperm.xlu0 %907, %v819
  %v909 = vpop.permute.xlu0 %908
  %910 = vset.pattern.permute.xlu0 0
  %911 = vperm.xlu0 %910, %v820
  %v912 = vpop.permute.xlu0 %911
  %913 = vset.pattern.permute.xlu0 0
  %914 = vperm.xlu0 %913, %v821
  %v915 = vpop.permute.xlu0 %914
  %916 = vset.pattern.permute.xlu0 0
  %917 = vperm.xlu0 %916, %v822
  %v918 = vpop.permute.xlu0 %917
  %vm919 = vcmp.eq.s32.totalorder %v825, 1
  %vm920 = vcmp.eq.s32.totalorder %v828, 1
  %vm921 = vcmp.eq.s32.totalorder %v831, 1
  %vm922 = vcmp.eq.s32.totalorder %v834, 1
  %vm923 = vcmp.eq.s32.totalorder %v837, 1
  %vm924 = vcmp.eq.s32.totalorder %v840, 1
  %vm925 = vcmp.eq.s32.totalorder %v843, 1
  %vm926 = vcmp.eq.s32.totalorder %v846, 1
  %vm927 = vcmp.eq.s32.totalorder %v849, 1
  %vm928 = vcmp.eq.s32.totalorder %v852, 1
  %vm929 = vcmp.eq.s32.totalorder %v855, 1
  %vm930 = vcmp.eq.s32.totalorder %v858, 1
  %vm931 = vcmp.eq.s32.totalorder %v861, 1
  %vm932 = vcmp.eq.s32.totalorder %v864, 1
  %vm933 = vcmp.eq.s32.totalorder %v867, 1
  %vm934 = vcmp.eq.s32.totalorder %v870, 1
  %vm935 = vcmp.eq.s32.totalorder %v873, 1
  %vm936 = vcmp.eq.s32.totalorder %v876, 1
  %vm937 = vcmp.eq.s32.totalorder %v879, 1
  %vm938 = vcmp.eq.s32.totalorder %v882, 1
  %vm939 = vcmp.eq.s32.totalorder %v885, 1
  %vm940 = vcmp.eq.s32.totalorder %v888, 1
  %vm941 = vcmp.eq.s32.totalorder %v891, 1
  %vm942 = vcmp.eq.s32.totalorder %v894, 1
  %vm943 = vcmp.eq.s32.totalorder %v897, 1
  %vm944 = vcmp.eq.s32.totalorder %v900, 1
  %vm945 = vcmp.eq.s32.totalorder %v903, 1
  %vm946 = vcmp.eq.s32.totalorder %v906, 1
  %vm947 = vcmp.eq.s32.totalorder %v909, 1
  %vm948 = vcmp.eq.s32.totalorder %v912, 1
  %vm949 = vcmp.eq.s32.totalorder %v915, 1
  %vm950 = vcmp.eq.s32.totalorder %v918, 1
  %v951 = vperm.slane %v758, 0
  %v952 = vsel %vm919, %v951, %v726
  %v953 = vsel %vm920, %v951, %v727
  %v954 = vsel %vm921, %v951, %v728
  %v955 = vsel %vm922, %v951, %v729
  %v956 = vsel %vm923, %v951, %v730
  %v957 = vsel %vm924, %v951, %v731
  %v958 = vsel %vm925, %v951, %v732
  %v959 = vsel %vm926, %v951, %v733
  %v960 = vsel %vm927, %v951, %v734
  %v961 = vsel %vm928, %v951, %v735
  %v962 = vsel %vm929, %v951, %v736
  %v963 = vsel %vm930, %v951, %v737
  %v964 = vsel %vm931, %v951, %v738
  %v965 = vsel %vm932, %v951, %v739
  %v966 = vsel %vm933, %v951, %v740
  %v967 = vsel %vm934, %v951, %v741
  %v968 = vsel %vm935, %v951, %v742
  %v969 = vsel %vm936, %v951, %v743
  %v970 = vsel %vm937, %v951, %v744
  %v971 = vsel %vm938, %v951, %v745
  %v972 = vsel %vm939, %v951, %v746
  %v973 = vsel %vm940, %v951, %v747
  %v974 = vsel %vm941, %v951, %v748
  %v975 = vsel %vm942, %v951, %v749
  %v976 = vsel %vm943, %v951, %v750
  %v977 = vsel %vm944, %v951, %v751
  %v978 = vsel %vm945, %v951, %v752
  %v979 = vsel %vm946, %v951, %v753
  %v980 = vsel %vm947, %v951, %v754
  %v981 = vsel %vm948, %v951, %v755
  %v982 = vsel %vm949, %v951, %v756
  %v983 = vsel %vm950, %v951, %v757
  %v984 = vld [vmem:[%s2 + $0x4] sm:$0x1]
  %vm985 = vcmp.eq.s32.totalorder %v48, 4
  %vm986 = vcmp.eq.s32.totalorder %v49, 4
  %vm987 = vcmp.eq.s32.totalorder %v50, 4
  %vm988 = vcmp.eq.s32.totalorder %v51, 4
  %vm989 = vcmp.eq.s32.totalorder %v52, 4
  %vm990 = vcmp.eq.s32.totalorder %v53, 4
  %vm991 = vcmp.eq.s32.totalorder %v54, 4
  %vm992 = vcmp.eq.s32.totalorder %v55, 4
  %vm993 = vcmp.eq.s32.totalorder %v56, 4
  %vm994 = vcmp.eq.s32.totalorder %v57, 4
  %vm995 = vcmp.eq.s32.totalorder %v58, 4
  %vm996 = vcmp.eq.s32.totalorder %v59, 4
  %vm997 = vcmp.eq.s32.totalorder %v60, 4
  %vm998 = vcmp.eq.s32.totalorder %v61, 4
  %vm999 = vcmp.eq.s32.totalorder %v62, 4
  %vm1000 = vcmp.eq.s32.totalorder %v63, 4
  %vm1001 = vcmp.eq.s32.totalorder %v64, 4
  %vm1002 = vcmp.eq.s32.totalorder %v65, 4
  %vm1003 = vcmp.eq.s32.totalorder %v66, 4
  %vm1004 = vcmp.eq.s32.totalorder %v67, 4
  %vm1005 = vcmp.eq.s32.totalorder %v68, 4
  %vm1006 = vcmp.eq.s32.totalorder %v69, 4
  %vm1007 = vcmp.eq.s32.totalorder %v70, 4
  %vm1008 = vcmp.eq.s32.totalorder %v71, 4
  %vm1009 = vcmp.eq.s32.totalorder %v72, 4
  %vm1010 = vcmp.eq.s32.totalorder %v73, 4
  %vm1011 = vcmp.eq.s32.totalorder %v74, 4
  %vm1012 = vcmp.eq.s32.totalorder %v75, 4
  %vm1013 = vcmp.eq.s32.totalorder %v76, 4
  %vm1014 = vcmp.eq.s32.totalorder %v77, 4
  %vm1015 = vcmp.eq.s32.totalorder %v78, 4
  %vm1016 = vcmp.eq.s32.totalorder %v79, 4
  %v1017 = vsel %vm985, 1, 0
  %v1018 = vsel %vm986, 1, 0
  %v1019 = vsel %vm987, 1, 0
  %v1020 = vsel %vm988, 1, 0
  %v1021 = vsel %vm989, 1, 0
  %v1022 = vsel %vm990, 1, 0
  %v1023 = vsel %vm991, 1, 0
  %v1024 = vsel %vm992, 1, 0
  %v1025 = vsel %vm993, 1, 0
  %v1026 = vsel %vm994, 1, 0
  %v1027 = vsel %vm995, 1, 0
  %v1028 = vsel %vm996, 1, 0
  %v1029 = vsel %vm997, 1, 0
  %v1030 = vsel %vm998, 1, 0
  %v1031 = vsel %vm999, 1, 0
  %v1032 = vsel %vm1000, 1, 0
  %v1033 = vsel %vm1001, 1, 0
  %v1034 = vsel %vm1002, 1, 0
  %v1035 = vsel %vm1003, 1, 0
  %v1036 = vsel %vm1004, 1, 0
  %v1037 = vsel %vm1005, 1, 0
  %v1038 = vsel %vm1006, 1, 0
  %v1039 = vsel %vm1007, 1, 0
  %v1040 = vsel %vm1008, 1, 0
  %v1041 = vsel %vm1009, 1, 0
  %v1042 = vsel %vm1010, 1, 0
  %v1043 = vsel %vm1011, 1, 0
  %v1044 = vsel %vm1012, 1, 0
  %v1045 = vsel %vm1013, 1, 0
  %v1046 = vsel %vm1014, 1, 0
  %v1047 = vsel %vm1015, 1, 0
  %v1048 = vsel %vm1016, 1, 0
  %1049 = vset.pattern.permute.xlu0 0
  %1050 = vperm.xlu0 %1049, %v1017
  %v1051 = vpop.permute.xlu0 %1050
  %1052 = vset.pattern.permute.xlu0 0
  %1053 = vperm.xlu0 %1052, %v1018
  %v1054 = vpop.permute.xlu0 %1053
  %1055 = vset.pattern.permute.xlu0 0
  %1056 = vperm.xlu0 %1055, %v1019
  %v1057 = vpop.permute.xlu0 %1056
  %1058 = vset.pattern.permute.xlu0 0
  %1059 = vperm.xlu0 %1058, %v1020
  %v1060 = vpop.permute.xlu0 %1059
  %1061 = vset.pattern.permute.xlu0 0
  %1062 = vperm.xlu0 %1061, %v1021
  %v1063 = vpop.permute.xlu0 %1062
  %1064 = vset.pattern.permute.xlu0 0
  %1065 = vperm.xlu0 %1064, %v1022
  %v1066 = vpop.permute.xlu0 %1065
  %1067 = vset.pattern.permute.xlu0 0
  %1068 = vperm.xlu0 %1067, %v1023
  %v1069 = vpop.permute.xlu0 %1068
  %1070 = vset.pattern.permute.xlu0 0
  %1071 = vperm.xlu0 %1070, %v1024
  %v1072 = vpop.permute.xlu0 %1071
  %1073 = vset.pattern.permute.xlu0 0
  %1074 = vperm.xlu0 %1073, %v1025
  %v1075 = vpop.permute.xlu0 %1074
  %1076 = vset.pattern.permute.xlu0 0
  %1077 = vperm.xlu0 %1076, %v1026
  %v1078 = vpop.permute.xlu0 %1077
  %1079 = vset.pattern.permute.xlu0 0
  %1080 = vperm.xlu0 %1079, %v1027
  %v1081 = vpop.permute.xlu0 %1080
  %1082 = vset.pattern.permute.xlu0 0
  %1083 = vperm.xlu0 %1082, %v1028
  %v1084 = vpop.permute.xlu0 %1083
  %1085 = vset.pattern.permute.xlu0 0
  %1086 = vperm.xlu0 %1085, %v1029
  %v1087 = vpop.permute.xlu0 %1086
  %1088 = vset.pattern.permute.xlu0 0
  %1089 = vperm.xlu0 %1088, %v1030
  %v1090 = vpop.permute.xlu0 %1089
  %1091 = vset.pattern.permute.xlu0 0
  %1092 = vperm.xlu0 %1091, %v1031
  %v1093 = vpop.permute.xlu0 %1092
  %1094 = vset.pattern.permute.xlu0 0
  %1095 = vperm.xlu0 %1094, %v1032
  %v1096 = vpop.permute.xlu0 %1095
  %1097 = vset.pattern.permute.xlu0 0
  %1098 = vperm.xlu0 %1097, %v1033
  %v1099 = vpop.permute.xlu0 %1098
  %1100 = vset.pattern.permute.xlu0 0
  %1101 = vperm.xlu0 %1100, %v1034
  %v1102 = vpop.permute.xlu0 %1101
  %1103 = vset.pattern.permute.xlu0 0
  %1104 = vperm.xlu0 %1103, %v1035
  %v1105 = vpop.permute.xlu0 %1104
  %1106 = vset.pattern.permute.xlu0 0
  %1107 = vperm.xlu0 %1106, %v1036
  %v1108 = vpop.permute.xlu0 %1107
  %1109 = vset.pattern.permute.xlu0 0
  %1110 = vperm.xlu0 %1109, %v1037
  %v1111 = vpop.permute.xlu0 %1110
  %1112 = vset.pattern.permute.xlu0 0
  %1113 = vperm.xlu0 %1112, %v1038
  %v1114 = vpop.permute.xlu0 %1113
  %1115 = vset.pattern.permute.xlu0 0
  %1116 = vperm.xlu0 %1115, %v1039
  %v1117 = vpop.permute.xlu0 %1116
  %1118 = vset.pattern.permute.xlu0 0
  %1119 = vperm.xlu0 %1118, %v1040
  %v1120 = vpop.permute.xlu0 %1119
  %1121 = vset.pattern.permute.xlu0 0
  %1122 = vperm.xlu0 %1121, %v1041
  %v1123 = vpop.permute.xlu0 %1122
  %1124 = vset.pattern.permute.xlu0 0
  %1125 = vperm.xlu0 %1124, %v1042
  %v1126 = vpop.permute.xlu0 %1125
  %1127 = vset.pattern.permute.xlu0 0
  %1128 = vperm.xlu0 %1127, %v1043
  %v1129 = vpop.permute.xlu0 %1128
  %1130 = vset.pattern.permute.xlu0 0
  %1131 = vperm.xlu0 %1130, %v1044
  %v1132 = vpop.permute.xlu0 %1131
  %1133 = vset.pattern.permute.xlu0 0
  %1134 = vperm.xlu0 %1133, %v1045
  %v1135 = vpop.permute.xlu0 %1134
  %1136 = vset.pattern.permute.xlu0 0
  %1137 = vperm.xlu0 %1136, %v1046
  %v1138 = vpop.permute.xlu0 %1137
  %1139 = vset.pattern.permute.xlu0 0
  %1140 = vperm.xlu0 %1139, %v1047
  %v1141 = vpop.permute.xlu0 %1140
  %1142 = vset.pattern.permute.xlu0 0
  %1143 = vperm.xlu0 %1142, %v1048
  %v1144 = vpop.permute.xlu0 %1143
  %vm1145 = vcmp.eq.s32.totalorder %v1051, 1
  %vm1146 = vcmp.eq.s32.totalorder %v1054, 1
  %vm1147 = vcmp.eq.s32.totalorder %v1057, 1
  %vm1148 = vcmp.eq.s32.totalorder %v1060, 1
  %vm1149 = vcmp.eq.s32.totalorder %v1063, 1
  %vm1150 = vcmp.eq.s32.totalorder %v1066, 1
  %vm1151 = vcmp.eq.s32.totalorder %v1069, 1
  %vm1152 = vcmp.eq.s32.totalorder %v1072, 1
  %vm1153 = vcmp.eq.s32.totalorder %v1075, 1
  %vm1154 = vcmp.eq.s32.totalorder %v1078, 1
  %vm1155 = vcmp.eq.s32.totalorder %v1081, 1
  %vm1156 = vcmp.eq.s32.totalorder %v1084, 1
  %vm1157 = vcmp.eq.s32.totalorder %v1087, 1
  %vm1158 = vcmp.eq.s32.totalorder %v1090, 1
  %vm1159 = vcmp.eq.s32.totalorder %v1093, 1
  %vm1160 = vcmp.eq.s32.totalorder %v1096, 1
  %vm1161 = vcmp.eq.s32.totalorder %v1099, 1
  %vm1162 = vcmp.eq.s32.totalorder %v1102, 1
  %vm1163 = vcmp.eq.s32.totalorder %v1105, 1
  %vm1164 = vcmp.eq.s32.totalorder %v1108, 1
  %vm1165 = vcmp.eq.s32.totalorder %v1111, 1
  %vm1166 = vcmp.eq.s32.totalorder %v1114, 1
  %vm1167 = vcmp.eq.s32.totalorder %v1117, 1
  %vm1168 = vcmp.eq.s32.totalorder %v1120, 1
  %vm1169 = vcmp.eq.s32.totalorder %v1123, 1
  %vm1170 = vcmp.eq.s32.totalorder %v1126, 1
  %vm1171 = vcmp.eq.s32.totalorder %v1129, 1
  %vm1172 = vcmp.eq.s32.totalorder %v1132, 1
  %vm1173 = vcmp.eq.s32.totalorder %v1135, 1
  %vm1174 = vcmp.eq.s32.totalorder %v1138, 1
  %vm1175 = vcmp.eq.s32.totalorder %v1141, 1
  %vm1176 = vcmp.eq.s32.totalorder %v1144, 1
  %v1177 = vperm.slane %v984, 0
  %v1178 = vsel %vm1145, %v1177, %v952
  %v1179 = vsel %vm1146, %v1177, %v953
  %v1180 = vsel %vm1147, %v1177, %v954
  %v1181 = vsel %vm1148, %v1177, %v955
  %v1182 = vsel %vm1149, %v1177, %v956
  %v1183 = vsel %vm1150, %v1177, %v957
  %v1184 = vsel %vm1151, %v1177, %v958
  %v1185 = vsel %vm1152, %v1177, %v959
  %v1186 = vsel %vm1153, %v1177, %v960
  %v1187 = vsel %vm1154, %v1177, %v961
  %v1188 = vsel %vm1155, %v1177, %v962
  %v1189 = vsel %vm1156, %v1177, %v963
  %v1190 = vsel %vm1157, %v1177, %v964
  %v1191 = vsel %vm1158, %v1177, %v965
  %v1192 = vsel %vm1159, %v1177, %v966
  %v1193 = vsel %vm1160, %v1177, %v967
  %v1194 = vsel %vm1161, %v1177, %v968
  %v1195 = vsel %vm1162, %v1177, %v969
  %v1196 = vsel %vm1163, %v1177, %v970
  %v1197 = vsel %vm1164, %v1177, %v971
  %v1198 = vsel %vm1165, %v1177, %v972
  %v1199 = vsel %vm1166, %v1177, %v973
  %v1200 = vsel %vm1167, %v1177, %v974
  %v1201 = vsel %vm1168, %v1177, %v975
  %v1202 = vsel %vm1169, %v1177, %v976
  %v1203 = vsel %vm1170, %v1177, %v977
  %v1204 = vsel %vm1171, %v1177, %v978
  %v1205 = vsel %vm1172, %v1177, %v979
  %v1206 = vsel %vm1173, %v1177, %v980
  %v1207 = vsel %vm1174, %v1177, %v981
  %v1208 = vsel %vm1175, %v1177, %v982
  %v1209 = vsel %vm1176, %v1177, %v983
  %v1210 = vld [vmem:[%s2 + $0x5] sm:$0x1]
  %vm1211 = vcmp.eq.s32.totalorder %v48, 5
  %vm1212 = vcmp.eq.s32.totalorder %v49, 5
  %vm1213 = vcmp.eq.s32.totalorder %v50, 5
  %vm1214 = vcmp.eq.s32.totalorder %v51, 5
  %vm1215 = vcmp.eq.s32.totalorder %v52, 5
  %vm1216 = vcmp.eq.s32.totalorder %v53, 5
  %vm1217 = vcmp.eq.s32.totalorder %v54, 5
  %vm1218 = vcmp.eq.s32.totalorder %v55, 5
  %vm1219 = vcmp.eq.s32.totalorder %v56, 5
  %vm1220 = vcmp.eq.s32.totalorder %v57, 5
  %vm1221 = vcmp.eq.s32.totalorder %v58, 5
  %vm1222 = vcmp.eq.s32.totalorder %v59, 5
  %vm1223 = vcmp.eq.s32.totalorder %v60, 5
  %vm1224 = vcmp.eq.s32.totalorder %v61, 5
  %vm1225 = vcmp.eq.s32.totalorder %v62, 5
  %vm1226 = vcmp.eq.s32.totalorder %v63, 5
  %vm1227 = vcmp.eq.s32.totalorder %v64, 5
  %vm1228 = vcmp.eq.s32.totalorder %v65, 5
  %vm1229 = vcmp.eq.s32.totalorder %v66, 5
  %vm1230 = vcmp.eq.s32.totalorder %v67, 5
  %vm1231 = vcmp.eq.s32.totalorder %v68, 5
  %vm1232 = vcmp.eq.s32.totalorder %v69, 5
  %vm1233 = vcmp.eq.s32.totalorder %v70, 5
  %vm1234 = vcmp.eq.s32.totalorder %v71, 5
  %vm1235 = vcmp.eq.s32.totalorder %v72, 5
  %vm1236 = vcmp.eq.s32.totalorder %v73, 5
  %vm1237 = vcmp.eq.s32.totalorder %v74, 5
  %vm1238 = vcmp.eq.s32.totalorder %v75, 5
  %vm1239 = vcmp.eq.s32.totalorder %v76, 5
  %vm1240 = vcmp.eq.s32.totalorder %v77, 5
  %vm1241 = vcmp.eq.s32.totalorder %v78, 5
  %vm1242 = vcmp.eq.s32.totalorder %v79, 5
  %v1243 = vsel %vm1211, 1, 0
  %v1244 = vsel %vm1212, 1, 0
  %v1245 = vsel %vm1213, 1, 0
  %v1246 = vsel %vm1214, 1, 0
  %v1247 = vsel %vm1215, 1, 0
  %v1248 = vsel %vm1216, 1, 0
  %v1249 = vsel %vm1217, 1, 0
  %v1250 = vsel %vm1218, 1, 0
  %v1251 = vsel %vm1219, 1, 0
  %v1252 = vsel %vm1220, 1, 0
  %v1253 = vsel %vm1221, 1, 0
  %v1254 = vsel %vm1222, 1, 0
  %v1255 = vsel %vm1223, 1, 0
  %v1256 = vsel %vm1224, 1, 0
  %v1257 = vsel %vm1225, 1, 0
  %v1258 = vsel %vm1226, 1, 0
  %v1259 = vsel %vm1227, 1, 0
  %v1260 = vsel %vm1228, 1, 0
  %v1261 = vsel %vm1229, 1, 0
  %v1262 = vsel %vm1230, 1, 0
  %v1263 = vsel %vm1231, 1, 0
  %v1264 = vsel %vm1232, 1, 0
  %v1265 = vsel %vm1233, 1, 0
  %v1266 = vsel %vm1234, 1, 0
  %v1267 = vsel %vm1235, 1, 0
  %v1268 = vsel %vm1236, 1, 0
  %v1269 = vsel %vm1237, 1, 0
  %v1270 = vsel %vm1238, 1, 0
  %v1271 = vsel %vm1239, 1, 0
  %v1272 = vsel %vm1240, 1, 0
  %v1273 = vsel %vm1241, 1, 0
  %v1274 = vsel %vm1242, 1, 0
  %1275 = vset.pattern.permute.xlu0 0
  %1276 = vperm.xlu0 %1275, %v1243
  %v1277 = vpop.permute.xlu0 %1276
  %1278 = vset.pattern.permute.xlu0 0
  %1279 = vperm.xlu0 %1278, %v1244
  %v1280 = vpop.permute.xlu0 %1279
  %1281 = vset.pattern.permute.xlu0 0
  %1282 = vperm.xlu0 %1281, %v1245
  %v1283 = vpop.permute.xlu0 %1282
  %1284 = vset.pattern.permute.xlu0 0
  %1285 = vperm.xlu0 %1284, %v1246
  %v1286 = vpop.permute.xlu0 %1285
  %1287 = vset.pattern.permute.xlu0 0
  %1288 = vperm.xlu0 %1287, %v1247
  %v1289 = vpop.permute.xlu0 %1288
  %1290 = vset.pattern.permute.xlu0 0
  %1291 = vperm.xlu0 %1290, %v1248
  %v1292 = vpop.permute.xlu0 %1291
  %1293 = vset.pattern.permute.xlu0 0
  %1294 = vperm.xlu0 %1293, %v1249
  %v1295 = vpop.permute.xlu0 %1294
  %1296 = vset.pattern.permute.xlu0 0
  %1297 = vperm.xlu0 %1296, %v1250
  %v1298 = vpop.permute.xlu0 %1297
  %1299 = vset.pattern.permute.xlu0 0
  %1300 = vperm.xlu0 %1299, %v1251
  %v1301 = vpop.permute.xlu0 %1300
  %1302 = vset.pattern.permute.xlu0 0
  %1303 = vperm.xlu0 %1302, %v1252
  %v1304 = vpop.permute.xlu0 %1303
  %1305 = vset.pattern.permute.xlu0 0
  %1306 = vperm.xlu0 %1305, %v1253
  %v1307 = vpop.permute.xlu0 %1306
  %1308 = vset.pattern.permute.xlu0 0
  %1309 = vperm.xlu0 %1308, %v1254
  %v1310 = vpop.permute.xlu0 %1309
  %1311 = vset.pattern.permute.xlu0 0
  %1312 = vperm.xlu0 %1311, %v1255
  %v1313 = vpop.permute.xlu0 %1312
  %1314 = vset.pattern.permute.xlu0 0
  %1315 = vperm.xlu0 %1314, %v1256
  %v1316 = vpop.permute.xlu0 %1315
  %1317 = vset.pattern.permute.xlu0 0
  %1318 = vperm.xlu0 %1317, %v1257
  %v1319 = vpop.permute.xlu0 %1318
  %1320 = vset.pattern.permute.xlu0 0
  %1321 = vperm.xlu0 %1320, %v1258
  %v1322 = vpop.permute.xlu0 %1321
  %1323 = vset.pattern.permute.xlu0 0
  %1324 = vperm.xlu0 %1323, %v1259
  %v1325 = vpop.permute.xlu0 %1324
  %1326 = vset.pattern.permute.xlu0 0
  %1327 = vperm.xlu0 %1326, %v1260
  %v1328 = vpop.permute.xlu0 %1327
  %1329 = vset.pattern.permute.xlu0 0
  %1330 = vperm.xlu0 %1329, %v1261
  %v1331 = vpop.permute.xlu0 %1330
  %1332 = vset.pattern.permute.xlu0 0
  %1333 = vperm.xlu0 %1332, %v1262
  %v1334 = vpop.permute.xlu0 %1333
  %1335 = vset.pattern.permute.xlu0 0
  %1336 = vperm.xlu0 %1335, %v1263
  %v1337 = vpop.permute.xlu0 %1336
  %1338 = vset.pattern.permute.xlu0 0
  %1339 = vperm.xlu0 %1338, %v1264
  %v1340 = vpop.permute.xlu0 %1339
  %1341 = vset.pattern.permute.xlu0 0
  %1342 = vperm.xlu0 %1341, %v1265
  %v1343 = vpop.permute.xlu0 %1342
  %1344 = vset.pattern.permute.xlu0 0
  %1345 = vperm.xlu0 %1344, %v1266
  %v1346 = vpop.permute.xlu0 %1345
  %1347 = vset.pattern.permute.xlu0 0
  %1348 = vperm.xlu0 %1347, %v1267
  %v1349 = vpop.permute.xlu0 %1348
  %1350 = vset.pattern.permute.xlu0 0
  %1351 = vperm.xlu0 %1350, %v1268
  %v1352 = vpop.permute.xlu0 %1351
  %1353 = vset.pattern.permute.xlu0 0
  %1354 = vperm.xlu0 %1353, %v1269
  %v1355 = vpop.permute.xlu0 %1354
  %1356 = vset.pattern.permute.xlu0 0
  %1357 = vperm.xlu0 %1356, %v1270
  %v1358 = vpop.permute.xlu0 %1357
  %1359 = vset.pattern.permute.xlu0 0
  %1360 = vperm.xlu0 %1359, %v1271
  %v1361 = vpop.permute.xlu0 %1360
  %1362 = vset.pattern.permute.xlu0 0
  %1363 = vperm.xlu0 %1362, %v1272
  %v1364 = vpop.permute.xlu0 %1363
  %1365 = vset.pattern.permute.xlu0 0
  %1366 = vperm.xlu0 %1365, %v1273
  %v1367 = vpop.permute.xlu0 %1366
  %1368 = vset.pattern.permute.xlu0 0
  %1369 = vperm.xlu0 %1368, %v1274
  %v1370 = vpop.permute.xlu0 %1369
  %vm1371 = vcmp.eq.s32.totalorder %v1277, 1
  %vm1372 = vcmp.eq.s32.totalorder %v1280, 1
  %vm1373 = vcmp.eq.s32.totalorder %v1283, 1
  %vm1374 = vcmp.eq.s32.totalorder %v1286, 1
  %vm1375 = vcmp.eq.s32.totalorder %v1289, 1
  %vm1376 = vcmp.eq.s32.totalorder %v1292, 1
  %vm1377 = vcmp.eq.s32.totalorder %v1295, 1
  %vm1378 = vcmp.eq.s32.totalorder %v1298, 1
  %vm1379 = vcmp.eq.s32.totalorder %v1301, 1
  %vm1380 = vcmp.eq.s32.totalorder %v1304, 1
  %vm1381 = vcmp.eq.s32.totalorder %v1307, 1
  %vm1382 = vcmp.eq.s32.totalorder %v1310, 1
  %vm1383 = vcmp.eq.s32.totalorder %v1313, 1
  %vm1384 = vcmp.eq.s32.totalorder %v1316, 1
  %vm1385 = vcmp.eq.s32.totalorder %v1319, 1
  %vm1386 = vcmp.eq.s32.totalorder %v1322, 1
  %vm1387 = vcmp.eq.s32.totalorder %v1325, 1
  %vm1388 = vcmp.eq.s32.totalorder %v1328, 1
  %vm1389 = vcmp.eq.s32.totalorder %v1331, 1
  %vm1390 = vcmp.eq.s32.totalorder %v1334, 1
  %vm1391 = vcmp.eq.s32.totalorder %v1337, 1
  %vm1392 = vcmp.eq.s32.totalorder %v1340, 1
  %vm1393 = vcmp.eq.s32.totalorder %v1343, 1
  %vm1394 = vcmp.eq.s32.totalorder %v1346, 1
  %vm1395 = vcmp.eq.s32.totalorder %v1349, 1
  %vm1396 = vcmp.eq.s32.totalorder %v1352, 1
  %vm1397 = vcmp.eq.s32.totalorder %v1355, 1
  %vm1398 = vcmp.eq.s32.totalorder %v1358, 1
  %vm1399 = vcmp.eq.s32.totalorder %v1361, 1
  %vm1400 = vcmp.eq.s32.totalorder %v1364, 1
  %vm1401 = vcmp.eq.s32.totalorder %v1367, 1
  %vm1402 = vcmp.eq.s32.totalorder %v1370, 1
  %v1403 = vperm.slane %v1210, 0
  %v1404 = vsel %vm1371, %v1403, %v1178
  %v1405 = vsel %vm1372, %v1403, %v1179
  %v1406 = vsel %vm1373, %v1403, %v1180
  %v1407 = vsel %vm1374, %v1403, %v1181
  %v1408 = vsel %vm1375, %v1403, %v1182
  %v1409 = vsel %vm1376, %v1403, %v1183
  %v1410 = vsel %vm1377, %v1403, %v1184
  %v1411 = vsel %vm1378, %v1403, %v1185
  %v1412 = vsel %vm1379, %v1403, %v1186
  %v1413 = vsel %vm1380, %v1403, %v1187
  %v1414 = vsel %vm1381, %v1403, %v1188
  %v1415 = vsel %vm1382, %v1403, %v1189
  %v1416 = vsel %vm1383, %v1403, %v1190
  %v1417 = vsel %vm1384, %v1403, %v1191
  %v1418 = vsel %vm1385, %v1403, %v1192
  %v1419 = vsel %vm1386, %v1403, %v1193
  %v1420 = vsel %vm1387, %v1403, %v1194
  %v1421 = vsel %vm1388, %v1403, %v1195
  %v1422 = vsel %vm1389, %v1403, %v1196
  %v1423 = vsel %vm1390, %v1403, %v1197
  %v1424 = vsel %vm1391, %v1403, %v1198
  %v1425 = vsel %vm1392, %v1403, %v1199
  %v1426 = vsel %vm1393, %v1403, %v1200
  %v1427 = vsel %vm1394, %v1403, %v1201
  %v1428 = vsel %vm1395, %v1403, %v1202
  %v1429 = vsel %vm1396, %v1403, %v1203
  %v1430 = vsel %vm1397, %v1403, %v1204
  %v1431 = vsel %vm1398, %v1403, %v1205
  %v1432 = vsel %vm1399, %v1403, %v1206
  %v1433 = vsel %vm1400, %v1403, %v1207
  %v1434 = vsel %vm1401, %v1403, %v1208
  %v1435 = vsel %vm1402, %v1403, %v1209
  %v1436 = vld [vmem:[%s2 + $0x6] sm:$0x1]
  %vm1437 = vcmp.eq.s32.totalorder %v48, 6
  %vm1438 = vcmp.eq.s32.totalorder %v49, 6
  %vm1439 = vcmp.eq.s32.totalorder %v50, 6
  %vm1440 = vcmp.eq.s32.totalorder %v51, 6
  %vm1441 = vcmp.eq.s32.totalorder %v52, 6
  %vm1442 = vcmp.eq.s32.totalorder %v53, 6
  %vm1443 = vcmp.eq.s32.totalorder %v54, 6
  %vm1444 = vcmp.eq.s32.totalorder %v55, 6
  %vm1445 = vcmp.eq.s32.totalorder %v56, 6
  %vm1446 = vcmp.eq.s32.totalorder %v57, 6
  %vm1447 = vcmp.eq.s32.totalorder %v58, 6
  %vm1448 = vcmp.eq.s32.totalorder %v59, 6
  %vm1449 = vcmp.eq.s32.totalorder %v60, 6
  %vm1450 = vcmp.eq.s32.totalorder %v61, 6
  %vm1451 = vcmp.eq.s32.totalorder %v62, 6
  %vm1452 = vcmp.eq.s32.totalorder %v63, 6
  %vm1453 = vcmp.eq.s32.totalorder %v64, 6
  %vm1454 = vcmp.eq.s32.totalorder %v65, 6
  %vm1455 = vcmp.eq.s32.totalorder %v66, 6
  %vm1456 = vcmp.eq.s32.totalorder %v67, 6
  %vm1457 = vcmp.eq.s32.totalorder %v68, 6
  %vm1458 = vcmp.eq.s32.totalorder %v69, 6
  %vm1459 = vcmp.eq.s32.totalorder %v70, 6
  %vm1460 = vcmp.eq.s32.totalorder %v71, 6
  %vm1461 = vcmp.eq.s32.totalorder %v72, 6
  %vm1462 = vcmp.eq.s32.totalorder %v73, 6
  %vm1463 = vcmp.eq.s32.totalorder %v74, 6
  %vm1464 = vcmp.eq.s32.totalorder %v75, 6
  %vm1465 = vcmp.eq.s32.totalorder %v76, 6
  %vm1466 = vcmp.eq.s32.totalorder %v77, 6
  %vm1467 = vcmp.eq.s32.totalorder %v78, 6
  %vm1468 = vcmp.eq.s32.totalorder %v79, 6
  %v1469 = vsel %vm1437, 1, 0
  %v1470 = vsel %vm1438, 1, 0
  %v1471 = vsel %vm1439, 1, 0
  %v1472 = vsel %vm1440, 1, 0
  %v1473 = vsel %vm1441, 1, 0
  %v1474 = vsel %vm1442, 1, 0
  %v1475 = vsel %vm1443, 1, 0
  %v1476 = vsel %vm1444, 1, 0
  %v1477 = vsel %vm1445, 1, 0
  %v1478 = vsel %vm1446, 1, 0
  %v1479 = vsel %vm1447, 1, 0
  %v1480 = vsel %vm1448, 1, 0
  %v1481 = vsel %vm1449, 1, 0
  %v1482 = vsel %vm1450, 1, 0
  %v1483 = vsel %vm1451, 1, 0
  %v1484 = vsel %vm1452, 1, 0
  %v1485 = vsel %vm1453, 1, 0
  %v1486 = vsel %vm1454, 1, 0
  %v1487 = vsel %vm1455, 1, 0
  %v1488 = vsel %vm1456, 1, 0
  %v1489 = vsel %vm1457, 1, 0
  %v1490 = vsel %vm1458, 1, 0
  %v1491 = vsel %vm1459, 1, 0
  %v1492 = vsel %vm1460, 1, 0
  %v1493 = vsel %vm1461, 1, 0
  %v1494 = vsel %vm1462, 1, 0
  %v1495 = vsel %vm1463, 1, 0
  %v1496 = vsel %vm1464, 1, 0
  %v1497 = vsel %vm1465, 1, 0
  %v1498 = vsel %vm1466, 1, 0
  %v1499 = vsel %vm1467, 1, 0
  %v1500 = vsel %vm1468, 1, 0
  %1501 = vset.pattern.permute.xlu0 0
  %1502 = vperm.xlu0 %1501, %v1469
  %v1503 = vpop.permute.xlu0 %1502
  %1504 = vset.pattern.permute.xlu0 0
  %1505 = vperm.xlu0 %1504, %v1470
  %v1506 = vpop.permute.xlu0 %1505
  %1507 = vset.pattern.permute.xlu0 0
  %1508 = vperm.xlu0 %1507, %v1471
  %v1509 = vpop.permute.xlu0 %1508
  %1510 = vset.pattern.permute.xlu0 0
  %1511 = vperm.xlu0 %1510, %v1472
  %v1512 = vpop.permute.xlu0 %1511
  %1513 = vset.pattern.permute.xlu0 0
  %1514 = vperm.xlu0 %1513, %v1473
  %v1515 = vpop.permute.xlu0 %1514
  %1516 = vset.pattern.permute.xlu0 0
  %1517 = vperm.xlu0 %1516, %v1474
  %v1518 = vpop.permute.xlu0 %1517
  %1519 = vset.pattern.permute.xlu0 0
  %1520 = vperm.xlu0 %1519, %v1475
  %v1521 = vpop.permute.xlu0 %1520
  %1522 = vset.pattern.permute.xlu0 0
  %1523 = vperm.xlu0 %1522, %v1476
  %v1524 = vpop.permute.xlu0 %1523
  %1525 = vset.pattern.permute.xlu0 0
  %1526 = vperm.xlu0 %1525, %v1477
  %v1527 = vpop.permute.xlu0 %1526
  %1528 = vset.pattern.permute.xlu0 0
  %1529 = vperm.xlu0 %1528, %v1478
  %v1530 = vpop.permute.xlu0 %1529
  %1531 = vset.pattern.permute.xlu0 0
  %1532 = vperm.xlu0 %1531, %v1479
  %v1533 = vpop.permute.xlu0 %1532
  %1534 = vset.pattern.permute.xlu0 0
  %1535 = vperm.xlu0 %1534, %v1480
  %v1536 = vpop.permute.xlu0 %1535
  %1537 = vset.pattern.permute.xlu0 0
  %1538 = vperm.xlu0 %1537, %v1481
  %v1539 = vpop.permute.xlu0 %1538
  %1540 = vset.pattern.permute.xlu0 0
  %1541 = vperm.xlu0 %1540, %v1482
  %v1542 = vpop.permute.xlu0 %1541
  %1543 = vset.pattern.permute.xlu0 0
  %1544 = vperm.xlu0 %1543, %v1483
  %v1545 = vpop.permute.xlu0 %1544
  %1546 = vset.pattern.permute.xlu0 0
  %1547 = vperm.xlu0 %1546, %v1484
  %v1548 = vpop.permute.xlu0 %1547
  %1549 = vset.pattern.permute.xlu0 0
  %1550 = vperm.xlu0 %1549, %v1485
  %v1551 = vpop.permute.xlu0 %1550
  %1552 = vset.pattern.permute.xlu0 0
  %1553 = vperm.xlu0 %1552, %v1486
  %v1554 = vpop.permute.xlu0 %1553
  %1555 = vset.pattern.permute.xlu0 0
  %1556 = vperm.xlu0 %1555, %v1487
  %v1557 = vpop.permute.xlu0 %1556
  %1558 = vset.pattern.permute.xlu0 0
  %1559 = vperm.xlu0 %1558, %v1488
  %v1560 = vpop.permute.xlu0 %1559
  %1561 = vset.pattern.permute.xlu0 0
  %1562 = vperm.xlu0 %1561, %v1489
  %v1563 = vpop.permute.xlu0 %1562
  %1564 = vset.pattern.permute.xlu0 0
  %1565 = vperm.xlu0 %1564, %v1490
  %v1566 = vpop.permute.xlu0 %1565
  %1567 = vset.pattern.permute.xlu0 0
  %1568 = vperm.xlu0 %1567, %v1491
  %v1569 = vpop.permute.xlu0 %1568
  %1570 = vset.pattern.permute.xlu0 0
  %1571 = vperm.xlu0 %1570, %v1492
  %v1572 = vpop.permute.xlu0 %1571
  %1573 = vset.pattern.permute.xlu0 0
  %1574 = vperm.xlu0 %1573, %v1493
  %v1575 = vpop.permute.xlu0 %1574
  %1576 = vset.pattern.permute.xlu0 0
  %1577 = vperm.xlu0 %1576, %v1494
  %v1578 = vpop.permute.xlu0 %1577
  %1579 = vset.pattern.permute.xlu0 0
  %1580 = vperm.xlu0 %1579, %v1495
  %v1581 = vpop.permute.xlu0 %1580
  %1582 = vset.pattern.permute.xlu0 0
  %1583 = vperm.xlu0 %1582, %v1496
  %v1584 = vpop.permute.xlu0 %1583
  %1585 = vset.pattern.permute.xlu0 0
  %1586 = vperm.xlu0 %1585, %v1497
  %v1587 = vpop.permute.xlu0 %1586
  %1588 = vset.pattern.permute.xlu0 0
  %1589 = vperm.xlu0 %1588, %v1498
  %v1590 = vpop.permute.xlu0 %1589
  %1591 = vset.pattern.permute.xlu0 0
  %1592 = vperm.xlu0 %1591, %v1499
  %v1593 = vpop.permute.xlu0 %1592
  %1594 = vset.pattern.permute.xlu0 0
  %1595 = vperm.xlu0 %1594, %v1500
  %v1596 = vpop.permute.xlu0 %1595
  %vm1597 = vcmp.eq.s32.totalorder %v1503, 1
  %vm1598 = vcmp.eq.s32.totalorder %v1506, 1
  %vm1599 = vcmp.eq.s32.totalorder %v1509, 1
  %vm1600 = vcmp.eq.s32.totalorder %v1512, 1
  %vm1601 = vcmp.eq.s32.totalorder %v1515, 1
  %vm1602 = vcmp.eq.s32.totalorder %v1518, 1
  %vm1603 = vcmp.eq.s32.totalorder %v1521, 1
  %vm1604 = vcmp.eq.s32.totalorder %v1524, 1
  %vm1605 = vcmp.eq.s32.totalorder %v1527, 1
  %vm1606 = vcmp.eq.s32.totalorder %v1530, 1
  %vm1607 = vcmp.eq.s32.totalorder %v1533, 1
  %vm1608 = vcmp.eq.s32.totalorder %v1536, 1
  %vm1609 = vcmp.eq.s32.totalorder %v1539, 1
  %vm1610 = vcmp.eq.s32.totalorder %v1542, 1
  %vm1611 = vcmp.eq.s32.totalorder %v1545, 1
  %vm1612 = vcmp.eq.s32.totalorder %v1548, 1
  %vm1613 = vcmp.eq.s32.totalorder %v1551, 1
  %vm1614 = vcmp.eq.s32.totalorder %v1554, 1
  %vm1615 = vcmp.eq.s32.totalorder %v1557, 1
  %vm1616 = vcmp.eq.s32.totalorder %v1560, 1
  %vm1617 = vcmp.eq.s32.totalorder %v1563, 1
  %vm1618 = vcmp.eq.s32.totalorder %v1566, 1
  %vm1619 = vcmp.eq.s32.totalorder %v1569, 1
  %vm1620 = vcmp.eq.s32.totalorder %v1572, 1
  %vm1621 = vcmp.eq.s32.totalorder %v1575, 1
  %vm1622 = vcmp.eq.s32.totalorder %v1578, 1
  %vm1623 = vcmp.eq.s32.totalorder %v1581, 1
  %vm1624 = vcmp.eq.s32.totalorder %v1584, 1
  %vm1625 = vcmp.eq.s32.totalorder %v1587, 1
  %vm1626 = vcmp.eq.s32.totalorder %v1590, 1
  %vm1627 = vcmp.eq.s32.totalorder %v1593, 1
  %vm1628 = vcmp.eq.s32.totalorder %v1596, 1
  %v1629 = vperm.slane %v1436, 0
  %v1630 = vsel %vm1597, %v1629, %v1404
  %v1631 = vsel %vm1598, %v1629, %v1405
  %v1632 = vsel %vm1599, %v1629, %v1406
  %v1633 = vsel %vm1600, %v1629, %v1407
  %v1634 = vsel %vm1601, %v1629, %v1408
  %v1635 = vsel %vm1602, %v1629, %v1409
  %v1636 = vsel %vm1603, %v1629, %v1410
  %v1637 = vsel %vm1604, %v1629, %v1411
  %v1638 = vsel %vm1605, %v1629, %v1412
  %v1639 = vsel %vm1606, %v1629, %v1413
  %v1640 = vsel %vm1607, %v1629, %v1414
  %v1641 = vsel %vm1608, %v1629, %v1415
  %v1642 = vsel %vm1609, %v1629, %v1416
  %v1643 = vsel %vm1610, %v1629, %v1417
  %v1644 = vsel %vm1611, %v1629, %v1418
  %v1645 = vsel %vm1612, %v1629, %v1419
  %v1646 = vsel %vm1613, %v1629, %v1420
  %v1647 = vsel %vm1614, %v1629, %v1421
  %v1648 = vsel %vm1615, %v1629, %v1422
  %v1649 = vsel %vm1616, %v1629, %v1423
  %v1650 = vsel %vm1617, %v1629, %v1424
  %v1651 = vsel %vm1618, %v1629, %v1425
  %v1652 = vsel %vm1619, %v1629, %v1426
  %v1653 = vsel %vm1620, %v1629, %v1427
  %v1654 = vsel %vm1621, %v1629, %v1428
  %v1655 = vsel %vm1622, %v1629, %v1429
  %v1656 = vsel %vm1623, %v1629, %v1430
  %v1657 = vsel %vm1624, %v1629, %v1431
  %v1658 = vsel %vm1625, %v1629, %v1432
  %v1659 = vsel %vm1626, %v1629, %v1433
  %v1660 = vsel %vm1627, %v1629, %v1434
  %v1661 = vsel %vm1628, %v1629, %v1435
  %v1662 = vld [vmem:[%s2 + $0x7] sm:$0x1]
  %vm1663 = vcmp.eq.s32.totalorder %v48, 7
  %vm1664 = vcmp.eq.s32.totalorder %v49, 7
  %vm1665 = vcmp.eq.s32.totalorder %v50, 7
  %vm1666 = vcmp.eq.s32.totalorder %v51, 7
  %vm1667 = vcmp.eq.s32.totalorder %v52, 7
  %vm1668 = vcmp.eq.s32.totalorder %v53, 7
  %vm1669 = vcmp.eq.s32.totalorder %v54, 7
  %vm1670 = vcmp.eq.s32.totalorder %v55, 7
  %vm1671 = vcmp.eq.s32.totalorder %v56, 7
  %vm1672 = vcmp.eq.s32.totalorder %v57, 7
  %vm1673 = vcmp.eq.s32.totalorder %v58, 7
  %vm1674 = vcmp.eq.s32.totalorder %v59, 7
  %vm1675 = vcmp.eq.s32.totalorder %v60, 7
  %vm1676 = vcmp.eq.s32.totalorder %v61, 7
  %vm1677 = vcmp.eq.s32.totalorder %v62, 7
  %vm1678 = vcmp.eq.s32.totalorder %v63, 7
  %vm1679 = vcmp.eq.s32.totalorder %v64, 7
  %vm1680 = vcmp.eq.s32.totalorder %v65, 7
  %vm1681 = vcmp.eq.s32.totalorder %v66, 7
  %vm1682 = vcmp.eq.s32.totalorder %v67, 7
  %vm1683 = vcmp.eq.s32.totalorder %v68, 7
  %vm1684 = vcmp.eq.s32.totalorder %v69, 7
  %vm1685 = vcmp.eq.s32.totalorder %v70, 7
  %vm1686 = vcmp.eq.s32.totalorder %v71, 7
  %vm1687 = vcmp.eq.s32.totalorder %v72, 7
  %vm1688 = vcmp.eq.s32.totalorder %v73, 7
  %vm1689 = vcmp.eq.s32.totalorder %v74, 7
  %vm1690 = vcmp.eq.s32.totalorder %v75, 7
  %vm1691 = vcmp.eq.s32.totalorder %v76, 7
  %vm1692 = vcmp.eq.s32.totalorder %v77, 7
  %vm1693 = vcmp.eq.s32.totalorder %v78, 7
  %vm1694 = vcmp.eq.s32.totalorder %v79, 7
  %v1695 = vsel %vm1663, 1, 0
  %v1696 = vsel %vm1664, 1, 0
  %v1697 = vsel %vm1665, 1, 0
  %v1698 = vsel %vm1666, 1, 0
  %v1699 = vsel %vm1667, 1, 0
  %v1700 = vsel %vm1668, 1, 0
  %v1701 = vsel %vm1669, 1, 0
  %v1702 = vsel %vm1670, 1, 0
  %v1703 = vsel %vm1671, 1, 0
  %v1704 = vsel %vm1672, 1, 0
  %v1705 = vsel %vm1673, 1, 0
  %v1706 = vsel %vm1674, 1, 0
  %v1707 = vsel %vm1675, 1, 0
  %v1708 = vsel %vm1676, 1, 0
  %v1709 = vsel %vm1677, 1, 0
  %v1710 = vsel %vm1678, 1, 0
  %v1711 = vsel %vm1679, 1, 0
  %v1712 = vsel %vm1680, 1, 0
  %v1713 = vsel %vm1681, 1, 0
  %v1714 = vsel %vm1682, 1, 0
  %v1715 = vsel %vm1683, 1, 0
  %v1716 = vsel %vm1684, 1, 0
  %v1717 = vsel %vm1685, 1, 0
  %v1718 = vsel %vm1686, 1, 0
  %v1719 = vsel %vm1687, 1, 0
  %v1720 = vsel %vm1688, 1, 0
  %v1721 = vsel %vm1689, 1, 0
  %v1722 = vsel %vm1690, 1, 0
  %v1723 = vsel %vm1691, 1, 0
  %v1724 = vsel %vm1692, 1, 0
  %v1725 = vsel %vm1693, 1, 0
  %v1726 = vsel %vm1694, 1, 0
  %1727 = vset.pattern.permute.xlu0 0
  %1728 = vperm.xlu0 %1727, %v1695
  %v1729 = vpop.permute.xlu0 %1728
  %1730 = vset.pattern.permute.xlu0 0
  %1731 = vperm.xlu0 %1730, %v1696
  %v1732 = vpop.permute.xlu0 %1731
  %1733 = vset.pattern.permute.xlu0 0
  %1734 = vperm.xlu0 %1733, %v1697
  %v1735 = vpop.permute.xlu0 %1734
  %1736 = vset.pattern.permute.xlu0 0
  %1737 = vperm.xlu0 %1736, %v1698
  %v1738 = vpop.permute.xlu0 %1737
  %1739 = vset.pattern.permute.xlu0 0
  %1740 = vperm.xlu0 %1739, %v1699
  %v1741 = vpop.permute.xlu0 %1740
  %1742 = vset.pattern.permute.xlu0 0
  %1743 = vperm.xlu0 %1742, %v1700
  %v1744 = vpop.permute.xlu0 %1743
  %1745 = vset.pattern.permute.xlu0 0
  %1746 = vperm.xlu0 %1745, %v1701
  %v1747 = vpop.permute.xlu0 %1746
  %1748 = vset.pattern.permute.xlu0 0
  %1749 = vperm.xlu0 %1748, %v1702
  %v1750 = vpop.permute.xlu0 %1749
  %1751 = vset.pattern.permute.xlu0 0
  %1752 = vperm.xlu0 %1751, %v1703
  %v1753 = vpop.permute.xlu0 %1752
  %1754 = vset.pattern.permute.xlu0 0
  %1755 = vperm.xlu0 %1754, %v1704
  %v1756 = vpop.permute.xlu0 %1755
  %1757 = vset.pattern.permute.xlu0 0
  %1758 = vperm.xlu0 %1757, %v1705
  %v1759 = vpop.permute.xlu0 %1758
  %1760 = vset.pattern.permute.xlu0 0
  %1761 = vperm.xlu0 %1760, %v1706
  %v1762 = vpop.permute.xlu0 %1761
  %1763 = vset.pattern.permute.xlu0 0
  %1764 = vperm.xlu0 %1763, %v1707
  %v1765 = vpop.permute.xlu0 %1764
  %1766 = vset.pattern.permute.xlu0 0
  %1767 = vperm.xlu0 %1766, %v1708
  %v1768 = vpop.permute.xlu0 %1767
  %1769 = vset.pattern.permute.xlu0 0
  %1770 = vperm.xlu0 %1769, %v1709
  %v1771 = vpop.permute.xlu0 %1770
  %1772 = vset.pattern.permute.xlu0 0
  %1773 = vperm.xlu0 %1772, %v1710
  %v1774 = vpop.permute.xlu0 %1773
  %1775 = vset.pattern.permute.xlu0 0
  %1776 = vperm.xlu0 %1775, %v1711
  %v1777 = vpop.permute.xlu0 %1776
  %1778 = vset.pattern.permute.xlu0 0
  %1779 = vperm.xlu0 %1778, %v1712
  %v1780 = vpop.permute.xlu0 %1779
  %1781 = vset.pattern.permute.xlu0 0
  %1782 = vperm.xlu0 %1781, %v1713
  %v1783 = vpop.permute.xlu0 %1782
  %1784 = vset.pattern.permute.xlu0 0
  %1785 = vperm.xlu0 %1784, %v1714
  %v1786 = vpop.permute.xlu0 %1785
  %1787 = vset.pattern.permute.xlu0 0
  %1788 = vperm.xlu0 %1787, %v1715
  %v1789 = vpop.permute.xlu0 %1788
  %1790 = vset.pattern.permute.xlu0 0
  %1791 = vperm.xlu0 %1790, %v1716
  %v1792 = vpop.permute.xlu0 %1791
  %1793 = vset.pattern.permute.xlu0 0
  %1794 = vperm.xlu0 %1793, %v1717
  %v1795 = vpop.permute.xlu0 %1794
  %1796 = vset.pattern.permute.xlu0 0
  %1797 = vperm.xlu0 %1796, %v1718
  %v1798 = vpop.permute.xlu0 %1797
  %1799 = vset.pattern.permute.xlu0 0
  %1800 = vperm.xlu0 %1799, %v1719
  %v1801 = vpop.permute.xlu0 %1800
  %1802 = vset.pattern.permute.xlu0 0
  %1803 = vperm.xlu0 %1802, %v1720
  %v1804 = vpop.permute.xlu0 %1803
  %1805 = vset.pattern.permute.xlu0 0
  %1806 = vperm.xlu0 %1805, %v1721
  %v1807 = vpop.permute.xlu0 %1806
  %1808 = vset.pattern.permute.xlu0 0
  %1809 = vperm.xlu0 %1808, %v1722
  %v1810 = vpop.permute.xlu0 %1809
  %1811 = vset.pattern.permute.xlu0 0
  %1812 = vperm.xlu0 %1811, %v1723
  %v1813 = vpop.permute.xlu0 %1812
  %1814 = vset.pattern.permute.xlu0 0
  %1815 = vperm.xlu0 %1814, %v1724
  %v1816 = vpop.permute.xlu0 %1815
  %1817 = vset.pattern.permute.xlu0 0
  %1818 = vperm.xlu0 %1817, %v1725
  %v1819 = vpop.permute.xlu0 %1818
  %1820 = vset.pattern.permute.xlu0 0
  %1821 = vperm.xlu0 %1820, %v1726
  %v1822 = vpop.permute.xlu0 %1821
  %vm1823 = vcmp.eq.s32.totalorder %v1729, 1
  %vm1824 = vcmp.eq.s32.totalorder %v1732, 1
  %vm1825 = vcmp.eq.s32.totalorder %v1735, 1
  %vm1826 = vcmp.eq.s32.totalorder %v1738, 1
  %vm1827 = vcmp.eq.s32.totalorder %v1741, 1
  %vm1828 = vcmp.eq.s32.totalorder %v1744, 1
  %vm1829 = vcmp.eq.s32.totalorder %v1747, 1
  %vm1830 = vcmp.eq.s32.totalorder %v1750, 1
  %vm1831 = vcmp.eq.s32.totalorder %v1753, 1
  %vm1832 = vcmp.eq.s32.totalorder %v1756, 1
  %vm1833 = vcmp.eq.s32.totalorder %v1759, 1
  %vm1834 = vcmp.eq.s32.totalorder %v1762, 1
  %vm1835 = vcmp.eq.s32.totalorder %v1765, 1
  %vm1836 = vcmp.eq.s32.totalorder %v1768, 1
  %vm1837 = vcmp.eq.s32.totalorder %v1771, 1
  %vm1838 = vcmp.eq.s32.totalorder %v1774, 1
  %vm1839 = vcmp.eq.s32.totalorder %v1777, 1
  %vm1840 = vcmp.eq.s32.totalorder %v1780, 1
  %vm1841 = vcmp.eq.s32.totalorder %v1783, 1
  %vm1842 = vcmp.eq.s32.totalorder %v1786, 1
  %vm1843 = vcmp.eq.s32.totalorder %v1789, 1
  %vm1844 = vcmp.eq.s32.totalorder %v1792, 1
  %vm1845 = vcmp.eq.s32.totalorder %v1795, 1
  %vm1846 = vcmp.eq.s32.totalorder %v1798, 1
  %vm1847 = vcmp.eq.s32.totalorder %v1801, 1
  %vm1848 = vcmp.eq.s32.totalorder %v1804, 1
  %vm1849 = vcmp.eq.s32.totalorder %v1807, 1
  %vm1850 = vcmp.eq.s32.totalorder %v1810, 1
  %vm1851 = vcmp.eq.s32.totalorder %v1813, 1
  %vm1852 = vcmp.eq.s32.totalorder %v1816, 1
  %vm1853 = vcmp.eq.s32.totalorder %v1819, 1
  %vm1854 = vcmp.eq.s32.totalorder %v1822, 1
  %v1855 = vperm.slane %v1662, 0
  %v1856 = vsel %vm1823, %v1855, %v1630
  %v1857 = vsel %vm1824, %v1855, %v1631
  %v1858 = vsel %vm1825, %v1855, %v1632
  %v1859 = vsel %vm1826, %v1855, %v1633
  %v1860 = vsel %vm1827, %v1855, %v1634
  %v1861 = vsel %vm1828, %v1855, %v1635
  %v1862 = vsel %vm1829, %v1855, %v1636
  %v1863 = vsel %vm1830, %v1855, %v1637
  %v1864 = vsel %vm1831, %v1855, %v1638
  %v1865 = vsel %vm1832, %v1855, %v1639
  %v1866 = vsel %vm1833, %v1855, %v1640
  %v1867 = vsel %vm1834, %v1855, %v1641
  %v1868 = vsel %vm1835, %v1855, %v1642
  %v1869 = vsel %vm1836, %v1855, %v1643
  %v1870 = vsel %vm1837, %v1855, %v1644
  %v1871 = vsel %vm1838, %v1855, %v1645
  %v1872 = vsel %vm1839, %v1855, %v1646
  %v1873 = vsel %vm1840, %v1855, %v1647
  %v1874 = vsel %vm1841, %v1855, %v1648
  %v1875 = vsel %vm1842, %v1855, %v1649
  %v1876 = vsel %vm1843, %v1855, %v1650
  %v1877 = vsel %vm1844, %v1855, %v1651
  %v1878 = vsel %vm1845, %v1855, %v1652
  %v1879 = vsel %vm1846, %v1855, %v1653
  %v1880 = vsel %vm1847, %v1855, %v1654
  %v1881 = vsel %vm1848, %v1855, %v1655
  %v1882 = vsel %vm1849, %v1855, %v1656
  %v1883 = vsel %vm1850, %v1855, %v1657
  %v1884 = vsel %vm1851, %v1855, %v1658
  %v1885 = vsel %vm1852, %v1855, %v1659
  %v1886 = vsel %vm1853, %v1855, %v1660
  %v1887 = vsel %vm1854, %v1855, %v1661
  %v1888 = vld [vmem:[%s2 + $0x8] sm:$0x1]
  %vm1889 = vcmp.eq.s32.totalorder %v48, 8
  %vm1890 = vcmp.eq.s32.totalorder %v49, 8
  %vm1891 = vcmp.eq.s32.totalorder %v50, 8
  %vm1892 = vcmp.eq.s32.totalorder %v51, 8
  %vm1893 = vcmp.eq.s32.totalorder %v52, 8
  %vm1894 = vcmp.eq.s32.totalorder %v53, 8
  %vm1895 = vcmp.eq.s32.totalorder %v54, 8
  %vm1896 = vcmp.eq.s32.totalorder %v55, 8
  %vm1897 = vcmp.eq.s32.totalorder %v56, 8
  %vm1898 = vcmp.eq.s32.totalorder %v57, 8
  %vm1899 = vcmp.eq.s32.totalorder %v58, 8
  %vm1900 = vcmp.eq.s32.totalorder %v59, 8
  %vm1901 = vcmp.eq.s32.totalorder %v60, 8
  %vm1902 = vcmp.eq.s32.totalorder %v61, 8
  %vm1903 = vcmp.eq.s32.totalorder %v62, 8
  %vm1904 = vcmp.eq.s32.totalorder %v63, 8
  %vm1905 = vcmp.eq.s32.totalorder %v64, 8
  %vm1906 = vcmp.eq.s32.totalorder %v65, 8
  %vm1907 = vcmp.eq.s32.totalorder %v66, 8
  %vm1908 = vcmp.eq.s32.totalorder %v67, 8
  %vm1909 = vcmp.eq.s32.totalorder %v68, 8
  %vm1910 = vcmp.eq.s32.totalorder %v69, 8
  %vm1911 = vcmp.eq.s32.totalorder %v70, 8
  %vm1912 = vcmp.eq.s32.totalorder %v71, 8
  %vm1913 = vcmp.eq.s32.totalorder %v72, 8
  %vm1914 = vcmp.eq.s32.totalorder %v73, 8
  %vm1915 = vcmp.eq.s32.totalorder %v74, 8
  %vm1916 = vcmp.eq.s32.totalorder %v75, 8
  %vm1917 = vcmp.eq.s32.totalorder %v76, 8
  %vm1918 = vcmp.eq.s32.totalorder %v77, 8
  %vm1919 = vcmp.eq.s32.totalorder %v78, 8
  %vm1920 = vcmp.eq.s32.totalorder %v79, 8
  %v1921 = vsel %vm1889, 1, 0
  %v1922 = vsel %vm1890, 1, 0
  %v1923 = vsel %vm1891, 1, 0
  %v1924 = vsel %vm1892, 1, 0
  %v1925 = vsel %vm1893, 1, 0
  %v1926 = vsel %vm1894, 1, 0
  %v1927 = vsel %vm1895, 1, 0
  %v1928 = vsel %vm1896, 1, 0
  %v1929 = vsel %vm1897, 1, 0
  %v1930 = vsel %vm1898, 1, 0
  %v1931 = vsel %vm1899, 1, 0
  %v1932 = vsel %vm1900, 1, 0
  %v1933 = vsel %vm1901, 1, 0
  %v1934 = vsel %vm1902, 1, 0
  %v1935 = vsel %vm1903, 1, 0
  %v1936 = vsel %vm1904, 1, 0
  %v1937 = vsel %vm1905, 1, 0
  %v1938 = vsel %vm1906, 1, 0
  %v1939 = vsel %vm1907, 1, 0
  %v1940 = vsel %vm1908, 1, 0
  %v1941 = vsel %vm1909, 1, 0
  %v1942 = vsel %vm1910, 1, 0
  %v1943 = vsel %vm1911, 1, 0
  %v1944 = vsel %vm1912, 1, 0
  %v1945 = vsel %vm1913, 1, 0
  %v1946 = vsel %vm1914, 1, 0
  %v1947 = vsel %vm1915, 1, 0
  %v1948 = vsel %vm1916, 1, 0
  %v1949 = vsel %vm1917, 1, 0
  %v1950 = vsel %vm1918, 1, 0
  %v1951 = vsel %vm1919, 1, 0
  %v1952 = vsel %vm1920, 1, 0
  %1953 = vset.pattern.permute.xlu0 0
  %1954 = vperm.xlu0 %1953, %v1921
  %v1955 = vpop.permute.xlu0 %1954
  %1956 = vset.pattern.permute.xlu0 0
  %1957 = vperm.xlu0 %1956, %v1922
  %v1958 = vpop.permute.xlu0 %1957
  %1959 = vset.pattern.permute.xlu0 0
  %1960 = vperm.xlu0 %1959, %v1923
  %v1961 = vpop.permute.xlu0 %1960
  %1962 = vset.pattern.permute.xlu0 0
  %1963 = vperm.xlu0 %1962, %v1924
  %v1964 = vpop.permute.xlu0 %1963
  %1965 = vset.pattern.permute.xlu0 0
  %1966 = vperm.xlu0 %1965, %v1925
  %v1967 = vpop.permute.xlu0 %1966
  %1968 = vset.pattern.permute.xlu0 0
  %1969 = vperm.xlu0 %1968, %v1926
  %v1970 = vpop.permute.xlu0 %1969
  %1971 = vset.pattern.permute.xlu0 0
  %1972 = vperm.xlu0 %1971, %v1927
  %v1973 = vpop.permute.xlu0 %1972
  %1974 = vset.pattern.permute.xlu0 0
  %1975 = vperm.xlu0 %1974, %v1928
  %v1976 = vpop.permute.xlu0 %1975
  %1977 = vset.pattern.permute.xlu0 0
  %1978 = vperm.xlu0 %1977, %v1929
  %v1979 = vpop.permute.xlu0 %1978
  %1980 = vset.pattern.permute.xlu0 0
  %1981 = vperm.xlu0 %1980, %v1930
  %v1982 = vpop.permute.xlu0 %1981
  %1983 = vset.pattern.permute.xlu0 0
  %1984 = vperm.xlu0 %1983, %v1931
  %v1985 = vpop.permute.xlu0 %1984
  %1986 = vset.pattern.permute.xlu0 0
  %1987 = vperm.xlu0 %1986, %v1932
  %v1988 = vpop.permute.xlu0 %1987
  %1989 = vset.pattern.permute.xlu0 0
  %1990 = vperm.xlu0 %1989, %v1933
  %v1991 = vpop.permute.xlu0 %1990
  %1992 = vset.pattern.permute.xlu0 0
  %1993 = vperm.xlu0 %1992, %v1934
  %v1994 = vpop.permute.xlu0 %1993
  %1995 = vset.pattern.permute.xlu0 0
  %1996 = vperm.xlu0 %1995, %v1935
  %v1997 = vpop.permute.xlu0 %1996
  %1998 = vset.pattern.permute.xlu0 0
  %1999 = vperm.xlu0 %1998, %v1936
  %v2000 = vpop.permute.xlu0 %1999
  %2001 = vset.pattern.permute.xlu0 0
  %2002 = vperm.xlu0 %2001, %v1937
  %v2003 = vpop.permute.xlu0 %2002
  %2004 = vset.pattern.permute.xlu0 0
  %2005 = vperm.xlu0 %2004, %v1938
  %v2006 = vpop.permute.xlu0 %2005
  %2007 = vset.pattern.permute.xlu0 0
  %2008 = vperm.xlu0 %2007, %v1939
  %v2009 = vpop.permute.xlu0 %2008
  %2010 = vset.pattern.permute.xlu0 0
  %2011 = vperm.xlu0 %2010, %v1940
  %v2012 = vpop.permute.xlu0 %2011
  %2013 = vset.pattern.permute.xlu0 0
  %2014 = vperm.xlu0 %2013, %v1941
  %v2015 = vpop.permute.xlu0 %2014
  %2016 = vset.pattern.permute.xlu0 0
  %2017 = vperm.xlu0 %2016, %v1942
  %v2018 = vpop.permute.xlu0 %2017
  %2019 = vset.pattern.permute.xlu0 0
  %2020 = vperm.xlu0 %2019, %v1943
  %v2021 = vpop.permute.xlu0 %2020
  %2022 = vset.pattern.permute.xlu0 0
  %2023 = vperm.xlu0 %2022, %v1944
  %v2024 = vpop.permute.xlu0 %2023
  %2025 = vset.pattern.permute.xlu0 0
  %2026 = vperm.xlu0 %2025, %v1945
  %v2027 = vpop.permute.xlu0 %2026
  %2028 = vset.pattern.permute.xlu0 0
  %2029 = vperm.xlu0 %2028, %v1946
  %v2030 = vpop.permute.xlu0 %2029
  %2031 = vset.pattern.permute.xlu0 0
  %2032 = vperm.xlu0 %2031, %v1947
  %v2033 = vpop.permute.xlu0 %2032
  %2034 = vset.pattern.permute.xlu0 0
  %2035 = vperm.xlu0 %2034, %v1948
  %v2036 = vpop.permute.xlu0 %2035
  %2037 = vset.pattern.permute.xlu0 0
  %2038 = vperm.xlu0 %2037, %v1949
  %v2039 = vpop.permute.xlu0 %2038
  %2040 = vset.pattern.permute.xlu0 0
  %2041 = vperm.xlu0 %2040, %v1950
  %v2042 = vpop.permute.xlu0 %2041
  %2043 = vset.pattern.permute.xlu0 0
  %2044 = vperm.xlu0 %2043, %v1951
  %v2045 = vpop.permute.xlu0 %2044
  %2046 = vset.pattern.permute.xlu0 0
  %2047 = vperm.xlu0 %2046, %v1952
  %v2048 = vpop.permute.xlu0 %2047
  %vm2049 = vcmp.eq.s32.totalorder %v1955, 1
  %vm2050 = vcmp.eq.s32.totalorder %v1958, 1
  %vm2051 = vcmp.eq.s32.totalorder %v1961, 1
  %vm2052 = vcmp.eq.s32.totalorder %v1964, 1
  %vm2053 = vcmp.eq.s32.totalorder %v1967, 1
  %vm2054 = vcmp.eq.s32.totalorder %v1970, 1
  %vm2055 = vcmp.eq.s32.totalorder %v1973, 1
  %vm2056 = vcmp.eq.s32.totalorder %v1976, 1
  %vm2057 = vcmp.eq.s32.totalorder %v1979, 1
  %vm2058 = vcmp.eq.s32.totalorder %v1982, 1
  %vm2059 = vcmp.eq.s32.totalorder %v1985, 1
  %vm2060 = vcmp.eq.s32.totalorder %v1988, 1
  %vm2061 = vcmp.eq.s32.totalorder %v1991, 1
  %vm2062 = vcmp.eq.s32.totalorder %v1994, 1
  %vm2063 = vcmp.eq.s32.totalorder %v1997, 1
  %vm2064 = vcmp.eq.s32.totalorder %v2000, 1
  %vm2065 = vcmp.eq.s32.totalorder %v2003, 1
  %vm2066 = vcmp.eq.s32.totalorder %v2006, 1
  %vm2067 = vcmp.eq.s32.totalorder %v2009, 1
  %vm2068 = vcmp.eq.s32.totalorder %v2012, 1
  %vm2069 = vcmp.eq.s32.totalorder %v2015, 1
  %vm2070 = vcmp.eq.s32.totalorder %v2018, 1
  %vm2071 = vcmp.eq.s32.totalorder %v2021, 1
  %vm2072 = vcmp.eq.s32.totalorder %v2024, 1
  %vm2073 = vcmp.eq.s32.totalorder %v2027, 1
  %vm2074 = vcmp.eq.s32.totalorder %v2030, 1
  %vm2075 = vcmp.eq.s32.totalorder %v2033, 1
  %vm2076 = vcmp.eq.s32.totalorder %v2036, 1
  %vm2077 = vcmp.eq.s32.totalorder %v2039, 1
  %vm2078 = vcmp.eq.s32.totalorder %v2042, 1
  %vm2079 = vcmp.eq.s32.totalorder %v2045, 1
  %vm2080 = vcmp.eq.s32.totalorder %v2048, 1
  %v2081 = vperm.slane %v1888, 0
  %v2082 = vsel %vm2049, %v2081, %v1856
  %v2083 = vsel %vm2050, %v2081, %v1857
  %v2084 = vsel %vm2051, %v2081, %v1858
  %v2085 = vsel %vm2052, %v2081, %v1859
  %v2086 = vsel %vm2053, %v2081, %v1860
  %v2087 = vsel %vm2054, %v2081, %v1861
  %v2088 = vsel %vm2055, %v2081, %v1862
  %v2089 = vsel %vm2056, %v2081, %v1863
  %v2090 = vsel %vm2057, %v2081, %v1864
  %v2091 = vsel %vm2058, %v2081, %v1865
  %v2092 = vsel %vm2059, %v2081, %v1866
  %v2093 = vsel %vm2060, %v2081, %v1867
  %v2094 = vsel %vm2061, %v2081, %v1868
  %v2095 = vsel %vm2062, %v2081, %v1869
  %v2096 = vsel %vm2063, %v2081, %v1870
  %v2097 = vsel %vm2064, %v2081, %v1871
  %v2098 = vsel %vm2065, %v2081, %v1872
  %v2099 = vsel %vm2066, %v2081, %v1873
  %v2100 = vsel %vm2067, %v2081, %v1874
  %v2101 = vsel %vm2068, %v2081, %v1875
  %v2102 = vsel %vm2069, %v2081, %v1876
  %v2103 = vsel %vm2070, %v2081, %v1877
  %v2104 = vsel %vm2071, %v2081, %v1878
  %v2105 = vsel %vm2072, %v2081, %v1879
  %v2106 = vsel %vm2073, %v2081, %v1880
  %v2107 = vsel %vm2074, %v2081, %v1881
  %v2108 = vsel %vm2075, %v2081, %v1882
  %v2109 = vsel %vm2076, %v2081, %v1883
  %v2110 = vsel %vm2077, %v2081, %v1884
  %v2111 = vsel %vm2078, %v2081, %v1885
  %v2112 = vsel %vm2079, %v2081, %v1886
  %v2113 = vsel %vm2080, %v2081, %v1887
  %v2114 = vld [vmem:[%s2 + $0x9] sm:$0x1]
  %vm2115 = vcmp.eq.s32.totalorder %v48, 9
  %vm2116 = vcmp.eq.s32.totalorder %v49, 9
  %vm2117 = vcmp.eq.s32.totalorder %v50, 9
  %vm2118 = vcmp.eq.s32.totalorder %v51, 9
  %vm2119 = vcmp.eq.s32.totalorder %v52, 9
  %vm2120 = vcmp.eq.s32.totalorder %v53, 9
  %vm2121 = vcmp.eq.s32.totalorder %v54, 9
  %vm2122 = vcmp.eq.s32.totalorder %v55, 9
  %vm2123 = vcmp.eq.s32.totalorder %v56, 9
  %vm2124 = vcmp.eq.s32.totalorder %v57, 9
  %vm2125 = vcmp.eq.s32.totalorder %v58, 9
  %vm2126 = vcmp.eq.s32.totalorder %v59, 9
  %vm2127 = vcmp.eq.s32.totalorder %v60, 9
  %vm2128 = vcmp.eq.s32.totalorder %v61, 9
  %vm2129 = vcmp.eq.s32.totalorder %v62, 9
  %vm2130 = vcmp.eq.s32.totalorder %v63, 9
  %vm2131 = vcmp.eq.s32.totalorder %v64, 9
  %vm2132 = vcmp.eq.s32.totalorder %v65, 9
  %vm2133 = vcmp.eq.s32.totalorder %v66, 9
  %vm2134 = vcmp.eq.s32.totalorder %v67, 9
  %vm2135 = vcmp.eq.s32.totalorder %v68, 9
  %vm2136 = vcmp.eq.s32.totalorder %v69, 9
  %vm2137 = vcmp.eq.s32.totalorder %v70, 9
  %vm2138 = vcmp.eq.s32.totalorder %v71, 9
  %vm2139 = vcmp.eq.s32.totalorder %v72, 9
  %vm2140 = vcmp.eq.s32.totalorder %v73, 9
  %vm2141 = vcmp.eq.s32.totalorder %v74, 9
  %vm2142 = vcmp.eq.s32.totalorder %v75, 9
  %vm2143 = vcmp.eq.s32.totalorder %v76, 9
  %vm2144 = vcmp.eq.s32.totalorder %v77, 9
  %vm2145 = vcmp.eq.s32.totalorder %v78, 9
  %vm2146 = vcmp.eq.s32.totalorder %v79, 9
  %v2147 = vsel %vm2115, 1, 0
  %v2148 = vsel %vm2116, 1, 0
  %v2149 = vsel %vm2117, 1, 0
  %v2150 = vsel %vm2118, 1, 0
  %v2151 = vsel %vm2119, 1, 0
  %v2152 = vsel %vm2120, 1, 0
  %v2153 = vsel %vm2121, 1, 0
  %v2154 = vsel %vm2122, 1, 0
  %v2155 = vsel %vm2123, 1, 0
  %v2156 = vsel %vm2124, 1, 0
  %v2157 = vsel %vm2125, 1, 0
  %v2158 = vsel %vm2126, 1, 0
  %v2159 = vsel %vm2127, 1, 0
  %v2160 = vsel %vm2128, 1, 0
  %v2161 = vsel %vm2129, 1, 0
  %v2162 = vsel %vm2130, 1, 0
  %v2163 = vsel %vm2131, 1, 0
  %v2164 = vsel %vm2132, 1, 0
  %v2165 = vsel %vm2133, 1, 0
  %v2166 = vsel %vm2134, 1, 0
  %v2167 = vsel %vm2135, 1, 0
  %v2168 = vsel %vm2136, 1, 0
  %v2169 = vsel %vm2137, 1, 0
  %v2170 = vsel %vm2138, 1, 0
  %v2171 = vsel %vm2139, 1, 0
  %v2172 = vsel %vm2140, 1, 0
  %v2173 = vsel %vm2141, 1, 0
  %v2174 = vsel %vm2142, 1, 0
  %v2175 = vsel %vm2143, 1, 0
  %v2176 = vsel %vm2144, 1, 0
  %v2177 = vsel %vm2145, 1, 0
  %v2178 = vsel %vm2146, 1, 0
  %2179 = vset.pattern.permute.xlu0 0
  %2180 = vperm.xlu0 %2179, %v2147
  %v2181 = vpop.permute.xlu0 %2180
  %2182 = vset.pattern.permute.xlu0 0
  %2183 = vperm.xlu0 %2182, %v2148
  %v2184 = vpop.permute.xlu0 %2183
  %2185 = vset.pattern.permute.xlu0 0
  %2186 = vperm.xlu0 %2185, %v2149
  %v2187 = vpop.permute.xlu0 %2186
  %2188 = vset.pattern.permute.xlu0 0
  %2189 = vperm.xlu0 %2188, %v2150
  %v2190 = vpop.permute.xlu0 %2189
  %2191 = vset.pattern.permute.xlu0 0
  %2192 = vperm.xlu0 %2191, %v2151
  %v2193 = vpop.permute.xlu0 %2192
  %2194 = vset.pattern.permute.xlu0 0
  %2195 = vperm.xlu0 %2194, %v2152
  %v2196 = vpop.permute.xlu0 %2195
  %2197 = vset.pattern.permute.xlu0 0
  %2198 = vperm.xlu0 %2197, %v2153
  %v2199 = vpop.permute.xlu0 %2198
  %2200 = vset.pattern.permute.xlu0 0
  %2201 = vperm.xlu0 %2200, %v2154
  %v2202 = vpop.permute.xlu0 %2201
  %2203 = vset.pattern.permute.xlu0 0
  %2204 = vperm.xlu0 %2203, %v2155
  %v2205 = vpop.permute.xlu0 %2204
  %2206 = vset.pattern.permute.xlu0 0
  %2207 = vperm.xlu0 %2206, %v2156
  %v2208 = vpop.permute.xlu0 %2207
  %2209 = vset.pattern.permute.xlu0 0
  %2210 = vperm.xlu0 %2209, %v2157
  %v2211 = vpop.permute.xlu0 %2210
  %2212 = vset.pattern.permute.xlu0 0
  %2213 = vperm.xlu0 %2212, %v2158
  %v2214 = vpop.permute.xlu0 %2213
  %2215 = vset.pattern.permute.xlu0 0
  %2216 = vperm.xlu0 %2215, %v2159
  %v2217 = vpop.permute.xlu0 %2216
  %2218 = vset.pattern.permute.xlu0 0
  %2219 = vperm.xlu0 %2218, %v2160
  %v2220 = vpop.permute.xlu0 %2219
  %2221 = vset.pattern.permute.xlu0 0
  %2222 = vperm.xlu0 %2221, %v2161
  %v2223 = vpop.permute.xlu0 %2222
  %2224 = vset.pattern.permute.xlu0 0
  %2225 = vperm.xlu0 %2224, %v2162
  %v2226 = vpop.permute.xlu0 %2225
  %2227 = vset.pattern.permute.xlu0 0
  %2228 = vperm.xlu0 %2227, %v2163
  %v2229 = vpop.permute.xlu0 %2228
  %2230 = vset.pattern.permute.xlu0 0
  %2231 = vperm.xlu0 %2230, %v2164
  %v2232 = vpop.permute.xlu0 %2231
  %2233 = vset.pattern.permute.xlu0 0
  %2234 = vperm.xlu0 %2233, %v2165
  %v2235 = vpop.permute.xlu0 %2234
  %2236 = vset.pattern.permute.xlu0 0
  %2237 = vperm.xlu0 %2236, %v2166
  %v2238 = vpop.permute.xlu0 %2237
  %2239 = vset.pattern.permute.xlu0 0
  %2240 = vperm.xlu0 %2239, %v2167
  %v2241 = vpop.permute.xlu0 %2240
  %2242 = vset.pattern.permute.xlu0 0
  %2243 = vperm.xlu0 %2242, %v2168
  %v2244 = vpop.permute.xlu0 %2243
  %2245 = vset.pattern.permute.xlu0 0
  %2246 = vperm.xlu0 %2245, %v2169
  %v2247 = vpop.permute.xlu0 %2246
  %2248 = vset.pattern.permute.xlu0 0
  %2249 = vperm.xlu0 %2248, %v2170
  %v2250 = vpop.permute.xlu0 %2249
  %2251 = vset.pattern.permute.xlu0 0
  %2252 = vperm.xlu0 %2251, %v2171
  %v2253 = vpop.permute.xlu0 %2252
  %2254 = vset.pattern.permute.xlu0 0
  %2255 = vperm.xlu0 %2254, %v2172
  %v2256 = vpop.permute.xlu0 %2255
  %2257 = vset.pattern.permute.xlu0 0
  %2258 = vperm.xlu0 %2257, %v2173
  %v2259 = vpop.permute.xlu0 %2258
  %2260 = vset.pattern.permute.xlu0 0
  %2261 = vperm.xlu0 %2260, %v2174
  %v2262 = vpop.permute.xlu0 %2261
  %2263 = vset.pattern.permute.xlu0 0
  %2264 = vperm.xlu0 %2263, %v2175
  %v2265 = vpop.permute.xlu0 %2264
  %2266 = vset.pattern.permute.xlu0 0
  %2267 = vperm.xlu0 %2266, %v2176
  %v2268 = vpop.permute.xlu0 %2267
  %2269 = vset.pattern.permute.xlu0 0
  %2270 = vperm.xlu0 %2269, %v2177
  %v2271 = vpop.permute.xlu0 %2270
  %2272 = vset.pattern.permute.xlu0 0
  %2273 = vperm.xlu0 %2272, %v2178
  %v2274 = vpop.permute.xlu0 %2273
  %vm2275 = vcmp.eq.s32.totalorder %v2181, 1
  %vm2276 = vcmp.eq.s32.totalorder %v2184, 1
  %vm2277 = vcmp.eq.s32.totalorder %v2187, 1
  %vm2278 = vcmp.eq.s32.totalorder %v2190, 1
  %vm2279 = vcmp.eq.s32.totalorder %v2193, 1
  %vm2280 = vcmp.eq.s32.totalorder %v2196, 1
  %vm2281 = vcmp.eq.s32.totalorder %v2199, 1
  %vm2282 = vcmp.eq.s32.totalorder %v2202, 1
  %vm2283 = vcmp.eq.s32.totalorder %v2205, 1
  %vm2284 = vcmp.eq.s32.totalorder %v2208, 1
  %vm2285 = vcmp.eq.s32.totalorder %v2211, 1
  %vm2286 = vcmp.eq.s32.totalorder %v2214, 1
  %vm2287 = vcmp.eq.s32.totalorder %v2217, 1
  %vm2288 = vcmp.eq.s32.totalorder %v2220, 1
  %vm2289 = vcmp.eq.s32.totalorder %v2223, 1
  %vm2290 = vcmp.eq.s32.totalorder %v2226, 1
  %vm2291 = vcmp.eq.s32.totalorder %v2229, 1
  %vm2292 = vcmp.eq.s32.totalorder %v2232, 1
  %vm2293 = vcmp.eq.s32.totalorder %v2235, 1
  %vm2294 = vcmp.eq.s32.totalorder %v2238, 1
  %vm2295 = vcmp.eq.s32.totalorder %v2241, 1
  %vm2296 = vcmp.eq.s32.totalorder %v2244, 1
  %vm2297 = vcmp.eq.s32.totalorder %v2247, 1
  %vm2298 = vcmp.eq.s32.totalorder %v2250, 1
  %vm2299 = vcmp.eq.s32.totalorder %v2253, 1
  %vm2300 = vcmp.eq.s32.totalorder %v2256, 1
  %vm2301 = vcmp.eq.s32.totalorder %v2259, 1
  %vm2302 = vcmp.eq.s32.totalorder %v2262, 1
  %vm2303 = vcmp.eq.s32.totalorder %v2265, 1
  %vm2304 = vcmp.eq.s32.totalorder %v2268, 1
  %vm2305 = vcmp.eq.s32.totalorder %v2271, 1
  %vm2306 = vcmp.eq.s32.totalorder %v2274, 1
  %v2307 = vperm.slane %v2114, 0
  %v2308 = vsel %vm2275, %v2307, %v2082
  %v2309 = vsel %vm2276, %v2307, %v2083
  %v2310 = vsel %vm2277, %v2307, %v2084
  %v2311 = vsel %vm2278, %v2307, %v2085
  %v2312 = vsel %vm2279, %v2307, %v2086
  %v2313 = vsel %vm2280, %v2307, %v2087
  %v2314 = vsel %vm2281, %v2307, %v2088
  %v2315 = vsel %vm2282, %v2307, %v2089
  %v2316 = vsel %vm2283, %v2307, %v2090
  %v2317 = vsel %vm2284, %v2307, %v2091
  %v2318 = vsel %vm2285, %v2307, %v2092
  %v2319 = vsel %vm2286, %v2307, %v2093
  %v2320 = vsel %vm2287, %v2307, %v2094
  %v2321 = vsel %vm2288, %v2307, %v2095
  %v2322 = vsel %vm2289, %v2307, %v2096
  %v2323 = vsel %vm2290, %v2307, %v2097
  %v2324 = vsel %vm2291, %v2307, %v2098
  %v2325 = vsel %vm2292, %v2307, %v2099
  %v2326 = vsel %vm2293, %v2307, %v2100
  %v2327 = vsel %vm2294, %v2307, %v2101
  %v2328 = vsel %vm2295, %v2307, %v2102
  %v2329 = vsel %vm2296, %v2307, %v2103
  %v2330 = vsel %vm2297, %v2307, %v2104
  %v2331 = vsel %vm2298, %v2307, %v2105
  %v2332 = vsel %vm2299, %v2307, %v2106
  %v2333 = vsel %vm2300, %v2307, %v2107
  %v2334 = vsel %vm2301, %v2307, %v2108
  %v2335 = vsel %vm2302, %v2307, %v2109
  %v2336 = vsel %vm2303, %v2307, %v2110
  %v2337 = vsel %vm2304, %v2307, %v2111
  %v2338 = vsel %vm2305, %v2307, %v2112
  %v2339 = vsel %vm2306, %v2307, %v2113
  %v2340 = vsub.f32 %v15, %v2308
  %v2341 = vsub.f32 %v16, %v2309
  %v2342 = vsub.f32 %v17, %v2310
  %v2343 = vsub.f32 %v18, %v2311
  %v2344 = vsub.f32 %v19, %v2312
  %v2345 = vsub.f32 %v20, %v2313
  %v2346 = vsub.f32 %v21, %v2314
  %v2347 = vsub.f32 %v22, %v2315
  %v2348 = vsub.f32 %v23, %v2316
  %v2349 = vsub.f32 %v24, %v2317
  %v2350 = vsub.f32 %v25, %v2318
  %v2351 = vsub.f32 %v26, %v2319
  %v2352 = vsub.f32 %v27, %v2320
  %v2353 = vsub.f32 %v28, %v2321
  %v2354 = vsub.f32 %v29, %v2322
  %v2355 = vsub.f32 %v30, %v2323
  %v2356 = vsub.f32 %v31, %v2324
  %v2357 = vsub.f32 %v32, %v2325
  %v2358 = vsub.f32 %v33, %v2326
  %v2359 = vsub.f32 %v34, %v2327
  %v2360 = vsub.f32 %v35, %v2328
  %v2361 = vsub.f32 %v36, %v2329
  %v2362 = vsub.f32 %v37, %v2330
  %v2363 = vsub.f32 %v38, %v2331
  %v2364 = vsub.f32 %v39, %v2332
  %v2365 = vsub.f32 %v40, %v2333
  %v2366 = vsub.f32 %v41, %v2334
  %v2367 = vsub.f32 %v42, %v2335
  %v2368 = vsub.f32 %v43, %v2336
  %v2369 = vsub.f32 %v44, %v2337
  %v2370 = vsub.f32 %v45, %v2338
  %v2371 = vsub.f32 %v46, %v2339
  %v2372 = vmul.f32 %v2340, %v2340
  %v2373 = vmul.f32 %v2341, %v2341
  %v2374 = vmul.f32 %v2342, %v2342
  %v2375 = vmul.f32 %v2343, %v2343
  %v2376 = vmul.f32 %v2344, %v2344
  %v2377 = vmul.f32 %v2345, %v2345
  %v2378 = vmul.f32 %v2346, %v2346
  %v2379 = vmul.f32 %v2347, %v2347
  %v2380 = vmul.f32 %v2348, %v2348
  %v2381 = vmul.f32 %v2349, %v2349
  %v2382 = vmul.f32 %v2350, %v2350
  %v2383 = vmul.f32 %v2351, %v2351
  %v2384 = vmul.f32 %v2352, %v2352
  %v2385 = vmul.f32 %v2353, %v2353
  %v2386 = vmul.f32 %v2354, %v2354
  %v2387 = vmul.f32 %v2355, %v2355
  %v2388 = vmul.f32 %v2356, %v2356
  %v2389 = vmul.f32 %v2357, %v2357
  %v2390 = vmul.f32 %v2358, %v2358
  %v2391 = vmul.f32 %v2359, %v2359
  %v2392 = vmul.f32 %v2360, %v2360
  %v2393 = vmul.f32 %v2361, %v2361
  %v2394 = vmul.f32 %v2362, %v2362
  %v2395 = vmul.f32 %v2363, %v2363
  %v2396 = vmul.f32 %v2364, %v2364
  %v2397 = vmul.f32 %v2365, %v2365
  %v2398 = vmul.f32 %v2366, %v2366
  %v2399 = vmul.f32 %v2367, %v2367
  %v2400 = vmul.f32 %v2368, %v2368
  %v2401 = vmul.f32 %v2369, %v2369
  %v2402 = vmul.f32 %v2370, %v2370
  %v2403 = vmul.f32 %v2371, %v2371
  %2404 = vadd.xlane.f32.xlu0 %v2372
  %v2405 = vpop.xlane.xlu0 %2404
  %2406 = vadd.xlane.f32.xlu0 %v2373
  %v2407 = vpop.xlane.xlu0 %2406
  %2408 = vadd.xlane.f32.xlu0 %v2374
  %v2409 = vpop.xlane.xlu0 %2408
  %2410 = vadd.xlane.f32.xlu0 %v2375
  %v2411 = vpop.xlane.xlu0 %2410
  %2412 = vadd.xlane.f32.xlu0 %v2376
  %v2413 = vpop.xlane.xlu0 %2412
  %2414 = vadd.xlane.f32.xlu0 %v2377
  %v2415 = vpop.xlane.xlu0 %2414
  %2416 = vadd.xlane.f32.xlu0 %v2378
  %v2417 = vpop.xlane.xlu0 %2416
  %2418 = vadd.xlane.f32.xlu0 %v2379
  %v2419 = vpop.xlane.xlu0 %2418
  %2420 = vadd.xlane.f32.xlu0 %v2380
  %v2421 = vpop.xlane.xlu0 %2420
  %2422 = vadd.xlane.f32.xlu0 %v2381
  %v2423 = vpop.xlane.xlu0 %2422
  %2424 = vadd.xlane.f32.xlu0 %v2382
  %v2425 = vpop.xlane.xlu0 %2424
  %2426 = vadd.xlane.f32.xlu0 %v2383
  %v2427 = vpop.xlane.xlu0 %2426
  %2428 = vadd.xlane.f32.xlu0 %v2384
  %v2429 = vpop.xlane.xlu0 %2428
  %2430 = vadd.xlane.f32.xlu0 %v2385
  %v2431 = vpop.xlane.xlu0 %2430
  %2432 = vadd.xlane.f32.xlu0 %v2386
  %v2433 = vpop.xlane.xlu0 %2432
  %2434 = vadd.xlane.f32.xlu0 %v2387
  %v2435 = vpop.xlane.xlu0 %2434
  %2436 = vadd.xlane.f32.xlu0 %v2388
  %v2437 = vpop.xlane.xlu0 %2436
  %2438 = vadd.xlane.f32.xlu0 %v2389
  %v2439 = vpop.xlane.xlu0 %2438
  %2440 = vadd.xlane.f32.xlu0 %v2390
  %v2441 = vpop.xlane.xlu0 %2440
  %2442 = vadd.xlane.f32.xlu0 %v2391
  %v2443 = vpop.xlane.xlu0 %2442
  %2444 = vadd.xlane.f32.xlu0 %v2392
  %v2445 = vpop.xlane.xlu0 %2444
  %2446 = vadd.xlane.f32.xlu0 %v2393
  %v2447 = vpop.xlane.xlu0 %2446
  %2448 = vadd.xlane.f32.xlu0 %v2394
  %v2449 = vpop.xlane.xlu0 %2448
  %2450 = vadd.xlane.f32.xlu0 %v2395
  %v2451 = vpop.xlane.xlu0 %2450
  %2452 = vadd.xlane.f32.xlu0 %v2396
  %v2453 = vpop.xlane.xlu0 %2452
  %2454 = vadd.xlane.f32.xlu0 %v2397
  %v2455 = vpop.xlane.xlu0 %2454
  %2456 = vadd.xlane.f32.xlu0 %v2398
  %v2457 = vpop.xlane.xlu0 %2456
  %2458 = vadd.xlane.f32.xlu0 %v2399
  %v2459 = vpop.xlane.xlu0 %2458
  %2460 = vadd.xlane.f32.xlu0 %v2400
  %v2461 = vpop.xlane.xlu0 %2460
  %2462 = vadd.xlane.f32.xlu0 %v2401
  %v2463 = vpop.xlane.xlu0 %2462
  %2464 = vadd.xlane.f32.xlu0 %v2402
  %v2465 = vpop.xlane.xlu0 %2464
  %2466 = vadd.xlane.f32.xlu0 %v2403
  %v2467 = vpop.xlane.xlu0 %2466
  %v2468 = vmax.f32 %v2405, 1e-12
  %v2469 = vmax.f32 %v2407, 1e-12
  %v2470 = vmax.f32 %v2409, 1e-12
  %v2471 = vmax.f32 %v2411, 1e-12
  %v2472 = vmax.f32 %v2413, 1e-12
  %v2473 = vmax.f32 %v2415, 1e-12
  %v2474 = vmax.f32 %v2417, 1e-12
  %v2475 = vmax.f32 %v2419, 1e-12
  %v2476 = vmax.f32 %v2421, 1e-12
  %v2477 = vmax.f32 %v2423, 1e-12
  %v2478 = vmax.f32 %v2425, 1e-12
  %v2479 = vmax.f32 %v2427, 1e-12
  %v2480 = vmax.f32 %v2429, 1e-12
  %v2481 = vmax.f32 %v2431, 1e-12
  %v2482 = vmax.f32 %v2433, 1e-12
  %v2483 = vmax.f32 %v2435, 1e-12
  %v2484 = vmax.f32 %v2437, 1e-12
  %v2485 = vmax.f32 %v2439, 1e-12
  %v2486 = vmax.f32 %v2441, 1e-12
  %v2487 = vmax.f32 %v2443, 1e-12
  %v2488 = vmax.f32 %v2445, 1e-12
  %v2489 = vmax.f32 %v2447, 1e-12
  %v2490 = vmax.f32 %v2449, 1e-12
  %v2491 = vmax.f32 %v2451, 1e-12
  %v2492 = vmax.f32 %v2453, 1e-12
  %v2493 = vmax.f32 %v2455, 1e-12
  %v2494 = vmax.f32 %v2457, 1e-12
  %v2495 = vmax.f32 %v2459, 1e-12
  %v2496 = vmax.f32 %v2461, 1e-12
  %v2497 = vmax.f32 %v2463, 1e-12
  %v2498 = vmax.f32 %v2465, 1e-12
  %v2499 = vmax.f32 %v2467, 1e-12
  %v2500 = vmin.f32 %v2468, 1e+12
  %v2501 = vmin.f32 %v2469, 1e+12
  %v2502 = vmin.f32 %v2470, 1e+12
  %v2503 = vmin.f32 %v2471, 1e+12
  %v2504 = vmin.f32 %v2472, 1e+12
  %v2505 = vmin.f32 %v2473, 1e+12
  %v2506 = vmin.f32 %v2474, 1e+12
  %v2507 = vmin.f32 %v2475, 1e+12
  %v2508 = vmin.f32 %v2476, 1e+12
  %v2509 = vmin.f32 %v2477, 1e+12
  %v2510 = vmin.f32 %v2478, 1e+12
  %v2511 = vmin.f32 %v2479, 1e+12
  %v2512 = vmin.f32 %v2480, 1e+12
  %v2513 = vmin.f32 %v2481, 1e+12
  %v2514 = vmin.f32 %v2482, 1e+12
  %v2515 = vmin.f32 %v2483, 1e+12
  %v2516 = vmin.f32 %v2484, 1e+12
  %v2517 = vmin.f32 %v2485, 1e+12
  %v2518 = vmin.f32 %v2486, 1e+12
  %v2519 = vmin.f32 %v2487, 1e+12
  %v2520 = vmin.f32 %v2488, 1e+12
  %v2521 = vmin.f32 %v2489, 1e+12
  %v2522 = vmin.f32 %v2490, 1e+12
  %v2523 = vmin.f32 %v2491, 1e+12
  %v2524 = vmin.f32 %v2492, 1e+12
  %v2525 = vmin.f32 %v2493, 1e+12
  %v2526 = vmin.f32 %v2494, 1e+12
  %v2527 = vmin.f32 %v2495, 1e+12
  %v2528 = vmin.f32 %v2496, 1e+12
  %v2529 = vmin.f32 %v2497, 1e+12
  %v2530 = vmin.f32 %v2498, 1e+12
  %v2531 = vmin.f32 %v2499, 1e+12
  %vm2532 = vcmask 7168
  %v2533 = vsel %vm2532, %v2500, 0.0
  %v2534 = vsel %vm2532, %v2501, 0.0
  %v2535 = vadd.f32 %v2533, %v2534
  %v2536 = vsel %vm2532, %v2502, 0.0
  %v2537 = vadd.f32 %v2535, %v2536
  %v2538 = vsel %vm2532, %v2503, 0.0
  %v2539 = vadd.f32 %v2537, %v2538
  %v2540 = vsel %vm2532, %v2504, 0.0
  %v2541 = vadd.f32 %v2539, %v2540
  %v2542 = vsel %vm2532, %v2505, 0.0
  %v2543 = vadd.f32 %v2541, %v2542
  %v2544 = vsel %vm2532, %v2506, 0.0
  %v2545 = vadd.f32 %v2543, %v2544
  %v2546 = vsel %vm2532, %v2507, 0.0
  %v2547 = vadd.f32 %v2545, %v2546
  %v2548 = vsel %vm2532, %v2508, 0.0
  %v2549 = vadd.f32 %v2547, %v2548
  %v2550 = vsel %vm2532, %v2509, 0.0
  %v2551 = vadd.f32 %v2549, %v2550
  %v2552 = vsel %vm2532, %v2510, 0.0
  %v2553 = vadd.f32 %v2551, %v2552
  %v2554 = vsel %vm2532, %v2511, 0.0
  %v2555 = vadd.f32 %v2553, %v2554
  %v2556 = vsel %vm2532, %v2512, 0.0
  %v2557 = vadd.f32 %v2555, %v2556
  %v2558 = vsel %vm2532, %v2513, 0.0
  %v2559 = vadd.f32 %v2557, %v2558
  %v2560 = vsel %vm2532, %v2514, 0.0
  %v2561 = vadd.f32 %v2559, %v2560
  %v2562 = vsel %vm2532, %v2515, 0.0
  %v2563 = vadd.f32 %v2561, %v2562
  %v2564 = vsel %vm2532, %v2516, 0.0
  %v2565 = vadd.f32 %v2563, %v2564
  %v2566 = vsel %vm2532, %v2517, 0.0
  %v2567 = vadd.f32 %v2565, %v2566
  %v2568 = vsel %vm2532, %v2518, 0.0
  %v2569 = vadd.f32 %v2567, %v2568
  %v2570 = vsel %vm2532, %v2519, 0.0
  %v2571 = vadd.f32 %v2569, %v2570
  %v2572 = vsel %vm2532, %v2520, 0.0
  %v2573 = vadd.f32 %v2571, %v2572
  %v2574 = vsel %vm2532, %v2521, 0.0
  %v2575 = vadd.f32 %v2573, %v2574
  %v2576 = vsel %vm2532, %v2522, 0.0
  %v2577 = vadd.f32 %v2575, %v2576
  %v2578 = vsel %vm2532, %v2523, 0.0
  %v2579 = vadd.f32 %v2577, %v2578
  %v2580 = vsel %vm2532, %v2524, 0.0
  %v2581 = vadd.f32 %v2579, %v2580
  %v2582 = vsel %vm2532, %v2525, 0.0
  %v2583 = vadd.f32 %v2581, %v2582
  %v2584 = vsel %vm2532, %v2526, 0.0
  %v2585 = vadd.f32 %v2583, %v2584
  %v2586 = vsel %vm2532, %v2527, 0.0
  %v2587 = vadd.f32 %v2585, %v2586
  %v2588 = vsel %vm2532, %v2528, 0.0
  %v2589 = vadd.f32 %v2587, %v2588
  %v2590 = vsel %vm2532, %v2529, 0.0
  %v2591 = vadd.f32 %v2589, %v2590
  %v2592 = vsel %vm2532, %v2530, 0.0
  %v2593 = vadd.f32 %v2591, %v2592
  %v2594 = vsel %vm2532, %v2531, 0.0
  %v2595 = vadd.f32 %v2593, %v2594
  %2596 = vadd.xlane.f32.xlu0 %v2595
  %v2597 = vpop.xlane.xlu0 %2596
  %v2598 = vrot.slane %v2597, 4
  %v2599 = vadd.f32 %v2597, %v2598
  %v2600 = vrot.slane %v2599, 2
  %v2601 = vadd.f32 %v2599, %v2600
  %v2602 = vrot.slane %v2601, 1
  %v2603 = vadd.f32 %v2601, %v2602
  %s2604 = vtos %v2603
  %v2605 = vstv %s2604
  %2606 = vst [vmem:[%s3] sm:$0xff] %v2605
  // Predicated region
  $region14: #{center_loss.1} parent=0 // pred_check
    _
  $region15: #{center_loss.1} parent=0 // pred_check_branch
    %2608 = sbr.rel (0) target = $region17
  $region16: #{center_loss.1} parent=0 // pred_region
    _
  $region17: #{center_loss.1} parent=0 // pred_fallthru
    _
  // Predicated region
  $region18: #{center_loss.1} parent=0 // pred_check
    _
  $region19: #{center_loss.1} parent=0 // pred_check_branch
    %2610 = sbr.rel (0) target = $region21
  $region20: #{center_loss.1} parent=0 // pred_region
    _
  $region21: #{center_loss.1} parent=0 // pred_fallthru
    _

</llo_original>
